<compile_context>
chip_gen: v7x
topology: tpu7x:2x2x1
jax: 0.10.0
libtpu: 0.0.40
codegen_flags: <defaults>
</compile_context>

<pallas_src>
import math

import jax
import jax.numpy as jnp
from jax.experimental import pallas as pl
from jax.experimental.pallas import tpu as pltpu

EPS = 1e-20
K = 3          # kernel_size
MP = 3         # max_pool_size
PR = 8         # sublane halo rows above/below the interior of the row-shift planes


def _make_kernel(H, W, L):
    """Kernel over one lane-packed slab: H -> sublanes, (batch*W) -> lanes."""
    PH = H + 2 * PR
    I0 = PR
    C4 = (K * K) // 2

    def kernel(wd_ref, ws_ref, wsc_ref,                 # SMEM weights
               m_ref,                                   # (2, H, L) column masks
               dcd_ref, cd_ref, scs_ref, cs_ref,        # VMEM inputs  (H, L)
               xd_ref, xc_ref, scso_ref, cso_ref,       # VMEM outputs (H, L)
               r0, r1, r2, r3, r4, r5):                 # (PH, L) zero-halo planes
        f32 = jnp.float32
        planes = (r0, r1, r2, r3, r4, r5)

        mask_l = m_ref[0]        # valid when reading x-1
        mask_r = m_ref[1]        # valid when reading x+1

        def recip(x):
            # approx reciprocal (EUP slot) + one Newton-Raphson refinement
            y = pl.reciprocal(x, approx=True)
            return y * (2.0 - x * y)

        def col_shift(v, dx):
            # value at column x+dx inside the same image, zero outside.
            # Hoisted: called once per plane per direction (not per tap).
            if dx == -1:
                return pltpu.roll(v, 1, axis=1) * mask_l
            return pltpu.roll(v, L - 1, axis=1) * mask_r

        # zero only the two 8-row halo blocks the +-1 row reads touch
        # (interiors are rewritten below; re-zeroed every step so the kernel is
        # safe under megacore grid sharding).
        zhalo = jnp.zeros((PR, L), f32)
        for pln in planes:
            pln[0:PR, :] = zhalo
            pln[PR + H:PH, :] = zhalo

        def put(idx, v):
            planes[idx][I0:I0 + H, :] = v

        def row(idx, dy):
            # plane value at row y+dy, zero outside the image (zero halo)
            return planes[idx][I0 + dy:I0 + dy + H, :]

        dcd = dcd_ref[...]
        cd = cd_ref[...]
        d = dcd * recip(cd + EPS)
        p = d * cd                       # maximised -> j_max
        q = cd * recip(d + EPS)          # maximised -> j_min

        # ---- stage 1: fused max_pool2d(return_indices) + retrieve_indices ---
        # separable argmax-with-gather: column pass, then row pass through the
        # zero-halo planes.  First-wins (strict >) order matches the raster
        # argmax of the reference.
        d_l, d_r = col_shift(d, -1), col_shift(d, 1)
        cd_l, cd_r = col_shift(cd, -1), col_shift(cd, 1)
        p_l, p_r = col_shift(p, -1), col_shift(p, 1)
        q_l, q_r = col_shift(q, -1), col_shift(q, 1)

        def sel(best, vals, cand_best, cand_vals):
            up = cand_best > best
            return (jnp.where(up, cand_best, best),
                    [jnp.where(up, cv, v) for cv, v in zip(cand_vals, vals)])

        # column pass (kx = -1, 0, +1)
        bp, (dP, cdP) = p_l, [d_l, cd_l]
        bp, (dP, cdP) = sel(bp, [dP, cdP], p, [d, cd])
        bp, (dP, cdP) = sel(bp, [dP, cdP], p_r, [d_r, cd_r])
        bq, (dQ, cdQ) = q_l, [d_l, cd_l]
        bq, (dQ, cdQ) = sel(bq, [dQ, cdQ], q, [d, cd])
        bq, (dQ, cdQ) = sel(bq, [dQ, cdQ], q_r, [d_r, cd_r])

        # row pass (ky = -1, 0, +1)
        put(0, bp); put(1, dP); put(2, cdP)
        put(3, bq); put(4, dQ); put(5, cdQ)

        BP, (DP, CDP) = row(0, -1), [row(1, -1), row(2, -1)]
        BP, (DP, CDP) = sel(BP, [DP, CDP], bp, [dP, cdP])
        BP, (DP, CDP) = sel(BP, [DP, CDP], row(0, 1), [row(1, 1), row(2, 1)])
        BQ, (DQ, CDQ) = row(3, -1), [row(4, -1), row(5, -1)]
        BQ, (DQ, CDQ) = sel(BQ, [DQ, CDQ], bq, [dQ, cdQ])
        BQ, (DQ, CDQ) = sel(BQ, [DQ, CDQ], row(3, 1), [row(4, 1), row(5, 1)])

        w_prop = wsc_ref[0]
        w_pow = wsc_ref[1]
        s_new = jnp.exp(w_pow * jnp.log((DQ + EPS) * recip(DP + EPS)))
        cs_new = CDP * CDQ

        one_m = 1.0 - w_prop
        cs_mix = cs_ref[...] * w_prop + cs_new * one_m
        scs_mix = scs_ref[...] * w_prop + s_new * cs_new * one_m

        # ---- 3x3 conv helper with hoisted column shifts + halo row reads ----
        def conv3x3(v, w_ref, skip_center, pa, pb):
            vl = col_shift(v, -1)
            vr = col_shift(v, 1)

            def u(ky):
                acc = w_ref[ky * K + 0] * vl
                if not (skip_center and ky == 1):
                    acc = acc + w_ref[ky * K + 1] * v
                return acc + w_ref[ky * K + 2] * vr

            put(pa, u(0))
            put(pb, u(2))
            return row(pa, -1) + u(1) + row(pb, 1)

        # ---- stage 2: F.conv2d(., w_conv_s, padding=1), 1 in / 1 out channel
        cs_c = conv3x3(cs_mix, ws_ref, False, 0, 1)
        scs_c = conv3x3(scs_mix, ws_ref, False, 2, 3)
        s = scs_c * recip(cs_c + EPS)

        # ---- stage 3: unfold(s)-weighted normalized conv, factored ----------
        #   denom = w4 + s*A0,  num_d = w4*dcd + s*A1,  num_c = w4*cd + s*A2
        a0 = conv3x3(s, wd_ref, True, 4, 5)
        a1 = conv3x3(s * dcd, wd_ref, True, 0, 1)
        a2 = conv3x3(s * cd, wd_ref, True, 2, 3)

        w4 = wd_ref[C4]
        inv = recip(w4 + s * a0 + EPS)
        xd_ref[...] = (w4 * dcd + s * a1) * inv
        xc_ref[...] = (w4 * cd + s * a2) * inv
        scso_ref[...] = scs_c
        cso_ref[...] = cs_c

    return kernel


def _choose_packing(B, W, lane_budget=4096, min_split_lanes=1024):
    """Images per block, #blocks, padded batch; blocks are always lane-dense."""
    g = 128 // math.gcd(W, 128)              # batch granule so Bt*W % 128 == 0
    max_g = max(1, lane_budget // (g * W))   # granules per block under budget
    total_g = -(-B // g)
    blocks = -(-total_g // max_g)
    if blocks < 2 and total_g * g * W >= 2 * min_split_lanes:
        blocks = 2                           # let megacore (v7x) shard the grid
    per_g = min(max_g, -(-total_g // blocks))
    blocks = -(-total_g // per_g)
    return per_g * g, blocks, blocks * per_g * g


def usnc_conv_forward(x, scs, cs, w_conv_d, w_prop, w_pow, w_conv_s,
                      lane_budget=4096):
    B, C, H, W = cs.shape
    assert C == 1
    dcd, cd = x[:B], x[B:]

    wd = w_conv_d.reshape(K * K).astype(jnp.float32)
    ws = w_conv_s.reshape(K * K).astype(jnp.float32)
    wsc = jnp.stack([jnp.asarray(w_prop), jnp.asarray(w_pow)]).astype(jnp.float32)

    Bt, nb, Bp = _choose_packing(B, W, lane_budget)
    L = Bt * W

    def pack(a):      # (B,1,H,W) -> lane-dense (H, Bp*W), zero-padded batch
        a = a.reshape(B, H, W)
        if Bp != B:
            a = jnp.concatenate([a, jnp.zeros((Bp - B, H, W), a.dtype)], axis=0)
        return a.transpose(1, 0, 2).reshape(H, Bp * W)

    def unpack(a):    # (H, Bp*W) -> (B,1,H,W)
        return a.reshape(H, Bp, W).transpose(1, 0, 2)[:B].reshape(B, 1, H, W)

    # per-image column boundary masks, precomputed once on the host
    col = jnp.arange(L, dtype=jnp.int32) % W
    masks = jnp.broadcast_to(
        jnp.stack([(col != 0), (col != W - 1)]).astype(jnp.float32)[:, None, :],
        (2, H, L))

    blk = pl.BlockSpec((H, L), lambda i: (0, i))
    mblk = pl.BlockSpec((2, H, L), lambda i: (0, 0, 0))
    smem = pl.BlockSpec(memory_space=pltpu.MemorySpace.SMEM)
    out_shape = tuple(jax.ShapeDtypeStruct((H, Bp * W), jnp.float32)
                      for _ in range(4))

    # explicit VMEM budget: (4 in + 4 out) double-buffered blocks, the masks,
    # six halo planes, plus 2x headroom for register spills at large L.
    vmem_need = 4 * (8 * 2 * H * L + 2 * 2 * H * L + 6 * (H + 2 * PR) * L)
    vmem_limit = int(min(64 * 2 ** 20, max(32 * 2 ** 20, 2 * vmem_need)))

    cost = pl.CostEstimate(flops=200 * Bp * H * W,
                           transcendentals=8 * Bp * H * W,
                           bytes_accessed=8 * Bp * H * W * 4)

    xd, xc, scs_o, cs_o = pl.pallas_call(
        _make_kernel(H, W, L),
        out_shape=out_shape,
        grid=(nb,),
        in_specs=[smem, smem, smem, mblk, blk, blk, blk, blk],
        out_specs=(blk, blk, blk, blk),
        scratch_shapes=[pltpu.VMEM((H + 2 * PR, L), jnp.float32)
                        for _ in range(6)],
        compiler_params=pltpu.CompilerParams(
            dimension_semantics=("parallel",),
            vmem_limit_bytes=vmem_limit),
        cost_estimate=cost,
    )(wd, ws, wsc, masks, pack(dcd), pack(cd), pack(scs), pack(cs))

    xd, xc, scs_o, cs_o = (unpack(a) for a in (xd, xc, scs_o, cs_o))
    # torch: stack((x_dcd, x_cd), dim=1).view(2B, 1, H, W) -> interleaved batch
    x_out = jnp.stack((xd, xc), axis=1).reshape(2 * B, 1, H, W)
    return x_out, scs_o, cs_o


def prepare_weights(w_channel_d, w_spatial_d, w_pow_s, w_prop_s,
                    w_channel_s, w_spatial_s):
    sp = jax.nn.softplus
    wcd = sp(w_channel_d)
    wsd = sp(w_spatial_d)
    wprop = jax.nn.sigmoid(w_prop_s)
    wpow = sp(w_pow_s)
    wcs = sp(w_channel_s)
    wss = sp(w_spatial_s)
    # symmetric=True: mirror the first K//2 columns
    wsd = jnp.concatenate([wsd, wsd[:, :, :K // 2][:, :, ::-1]], axis=2)
    wss = jnp.concatenate([wss, wss[:, :, :K // 2][:, :, ::-1]], axis=2)
    wcd = wcd / jnp.sum(wcd, axis=1, keepdims=True)
    wsd = wsd / jnp.sum(wsd, axis=(1, 2), keepdims=True)
    wcs = wcs / jnp.sum(wcs, axis=1, keepdims=True)
    wss = wss / jnp.sum(wss, axis=(1, 2), keepdims=True)
    w_conv_d = jnp.einsum('oi,ihw->oihw', wcd, wsd).reshape(1, 1, K * K)
    w_conv_s = jnp.einsum('oi,ihw->oihw', wcs, wss)   # (1, 1, K, K)
    return w_conv_d, wprop[0], wpow[0], w_conv_s


def reference_forward(x, scs, cs, w_conv_d, w_prop, w_pow, w_conv_s):
    # pure-JAX replica of the torch forward (n_in=n_out=1 branch) for checking
    B, C, H, W = cs.shape
    dcd, cd = x[:B], x[B:]
    wd = w_conv_d.reshape(K * K)
    ws = w_conv_s.reshape(K * K)
    d = dcd / (cd + EPS)
    pad = lambda a: jnp.pad(a, ((0, 0), (0, 0), (1, 1), (1, 1)))

    def shifts(a_pad):
        return jnp.stack([a_pad[:, :, ky:ky + H, kx:kx + W]
                          for ky in range(3) for kx in range(3)], axis=0)

    dS, cdS = shifts(pad(d)), shifts(pad(cd))
    p = dS * cdS
    q = cdS / (dS + EPS)

    def argmax_gather(score, *vals):
        best = jnp.full(score.shape[1:], -jnp.inf)
        outs = [jnp.zeros(score.shape[1:]) for _ in vals]
        for k in range(9):
            up = score[k] > best
            best = jnp.where(up, score[k], best)
            outs = [jnp.where(up, v[k], o) for v, o in zip(vals, outs)]
        return outs

    d_max, cd_max = argmax_gather(p, dS, cdS)
    d_min, cd_min = argmax_gather(q, dS, cdS)
    s_new = jnp.exp(w_pow * jnp.log((d_min + EPS) / (d_max + EPS)))
    cs_new = cd_max * cd_min
    cs_mix = cs * w_prop + cs_new * (1 - w_prop)
    scs_mix = scs * w_prop + s_new * cs_new * (1 - w_prop)
    cs_c = jnp.einsum('k,kbchw->bchw', ws, shifts(pad(cs_mix)))
    scs_c = jnp.einsum('k,kbchw->bchw', ws, shifts(pad(scs_mix)))
    s = scs_c / (cs_c + EPS)
    w_s = shifts(pad(s)) * s[None]
    w_s = w_s.at[4].set(1.0)
    denom = jnp.einsum('k,kbchw->bchw', wd, w_s)
    num_d = jnp.einsum('k,kbchw->bchw', wd, w_s * shifts(pad(dcd)))
    num_c = jnp.einsum('k,kbchw->bchw', wd, w_s * shifts(pad(cd)))
    xd = num_d / (denom + EPS)
    xc = num_c / (denom + EPS)
    x_out = jnp.stack((xd, xc), axis=1).reshape(2 * B, 1, H, W)
    return x_out, scs_c, cs_c


if __name__ == "__main__":
    key = jax.random.PRNGKey(0)
    B, C, H, W = 8, 1, 16, 16     # B*W = 128 -> one fully lane-dense block
    ks = jax.random.split(key, 10)
    dcd = jax.random.uniform(ks[0], (B, C, H, W), jnp.float32, 0.1, 1.0)
    cd = jax.random.uniform(ks[1], (B, C, H, W), jnp.float32, 0.1, 1.0)
    x = jnp.concatenate([dcd, cd], axis=0)          # (2B, C, H, W)
    scs = jax.random.uniform(ks[2], (B, C, H, W), jnp.float32, 0.1, 1.0)
    cs = jax.random.uniform(ks[3], (B, C, H, W), jnp.float32, 0.1, 1.0)

    # deterministic parameter init (shapes per __init__)
    # TODO(synk): torch kaiming_uniform_ bounds not replicated exactly; any
    # deterministic values are fine for this synthetic kernel check.
    w_channel_d = jax.random.uniform(ks[4], (1, 1), jnp.float32, -1.0, 1.0)
    w_spatial_d = jax.random.uniform(ks[5], (1, K, (K + 1) // 2), jnp.float32, -1.0, 1.0)
    w_pow_s = jax.random.uniform(ks[6], (1,), jnp.float32, 0.0, 1.0)
    w_prop_s = jax.random.uniform(ks[7], (1,), jnp.float32, 0.0, 1.0)
    w_channel_s = jax.random.uniform(ks[8], (1, 1), jnp.float32, -1.0, 1.0)
    w_spatial_s = jax.random.uniform(ks[9], (1, K, (K + 1) // 2), jnp.float32, -1.0, 1.0)

    w_conv_d, w_prop, w_pow, w_conv_s = prepare_weights(
        w_channel_d, w_spatial_d, w_pow_s, w_prop_s, w_channel_s, w_spatial_s)

    out = jax.jit(usnc_conv_forward)(x, scs, cs, w_conv_d, w_prop, w_pow, w_conv_s)
    jax.block_until_ready(out)
    x_out, scs_out, cs_out = out

    ref_x, ref_scs, ref_cs = reference_forward(
        x, scs, cs, w_conv_d, w_prop, w_pow, w_conv_s)
    assert jnp.allclose(x_out, ref_x, rtol=1e-4, atol=1e-5), "x mismatch"
    assert jnp.allclose(scs_out, ref_scs, rtol=1e-4, atol=1e-5), "scs mismatch"
    assert jnp.allclose(cs_out, ref_cs, rtol=1e-4, atol=1e-5), "cs mismatch"
    print("KERNEL_OK")
</pallas_src>

<mosaic_0001>
module attributes {stable_mosaic.version = 11 : i64} {
  func.func @kernel(%arg0: i32, %arg1: memref<9xf32, #tpu.memory_space<smem>>, %arg2: memref<9xf32, #tpu.memory_space<smem>>, %arg3: memref<2xf32, #tpu.memory_space<smem>>, %arg4: memref<2x16x128xf32, #tpu.memory_space<vmem>>, %arg5: memref<16x128xf32, #tpu.memory_space<vmem>>, %arg6: memref<16x128xf32, #tpu.memory_space<vmem>>, %arg7: memref<16x128xf32, #tpu.memory_space<vmem>>, %arg8: memref<16x128xf32, #tpu.memory_space<vmem>>, %arg9: memref<16x128xf32, #tpu.memory_space<vmem>>, %arg10: memref<16x128xf32, #tpu.memory_space<vmem>>, %arg11: memref<16x128xf32, #tpu.memory_space<vmem>>, %arg12: memref<16x128xf32, #tpu.memory_space<vmem>>, %arg13: memref<32x128xf32, #tpu.memory_space<vmem>>, %arg14: memref<32x128xf32, #tpu.memory_space<vmem>>, %arg15: memref<32x128xf32, #tpu.memory_space<vmem>>, %arg16: memref<32x128xf32, #tpu.memory_space<vmem>>, %arg17: memref<32x128xf32, #tpu.memory_space<vmem>>, %arg18: memref<32x128xf32, #tpu.memory_space<vmem>>) attributes {dimension_semantics = [#tpu.dimension_semantics<parallel>], iteration_bounds = array<i64: 1>, scalar_prefetch = 0 : i64, scratch_operands = 6 : i64, tpu.core_type = #tpu.core_type<tc>, window_params = [{transform_indices = @transform_0, window_bounds = array<i64: 9>}, {transform_indices = @transform_1, window_bounds = array<i64: 9>}, {transform_indices = @transform_2, window_bounds = array<i64: 2>}, {pipeline_mode = #tpu.pipeline_mode<synchronous>, transform_indices = @transform_3, window_bounds = array<i64: 2, 16, 128>}, {transform_indices = @transform_4, window_bounds = array<i64: 16, 128>}, {transform_indices = @transform_5, window_bounds = array<i64: 16, 128>}, {transform_indices = @transform_6, window_bounds = array<i64: 16, 128>}, {transform_indices = @transform_7, window_bounds = array<i64: 16, 128>}, {transform_indices = @transform_8, window_bounds = array<i64: 16, 128>}, {transform_indices = @transform_9, window_bounds = array<i64: 16, 128>}, {transform_indices = @transform_10, window_bounds = array<i64: 16, 128>}, {transform_indices = @transform_11, window_bounds = array<i64: 16, 128>}]} {
    %c0 = arith.constant 0 : index
    %c0_0 = arith.constant 0 : index
    %c0_1 = arith.constant 0 : index
    %0 = vector.load %arg4[%c0, %c0_0, %c0_1] : memref<2x16x128xf32, #tpu.memory_space<vmem>>, vector<1x16x128xf32>
    %1 = vector.shape_cast %0 : vector<1x16x128xf32> to vector<16x128xf32>
    %c1 = arith.constant 1 : index
    %c0_2 = arith.constant 0 : index
    %c0_3 = arith.constant 0 : index
    %2 = vector.load %arg4[%c1, %c0_2, %c0_3] : memref<2x16x128xf32, #tpu.memory_space<vmem>>, vector<1x16x128xf32>
    %3 = vector.shape_cast %2 : vector<1x16x128xf32> to vector<16x128xf32>
    %cst = arith.constant 0.000000e+00 : f32
    %4 = vector.broadcast %cst : f32 to vector<8x128xf32>
    %c0_4 = arith.constant 0 : index
    %c0_5 = arith.constant 0 : index
    %5 = vector.load %arg13[%c0_4, %c0_5] : memref<32x128xf32, #tpu.memory_space<vmem>>, vector<8x128xf32>
    tpu.vector_store %arg13[%c0_4, %c0_5], %4 {strides = array<i32>} : memref<32x128xf32, #tpu.memory_space<vmem>>, vector<8x128xf32>,
    %c24 = arith.constant 24 : index
    %c0_6 = arith.constant 0 : index
    %6 = vector.load %arg13[%c24, %c0_6] : memref<32x128xf32, #tpu.memory_space<vmem>>, vector<8x128xf32>
    tpu.vector_store %arg13[%c24, %c0_6], %4 {strides = array<i32>} : memref<32x128xf32, #tpu.memory_space<vmem>>, vector<8x128xf32>,
    %c0_7 = arith.constant 0 : index
    %c0_8 = arith.constant 0 : index
    %7 = vector.load %arg14[%c0_7, %c0_8] : memref<32x128xf32, #tpu.memory_space<vmem>>, vector<8x128xf32>
    tpu.vector_store %arg14[%c0_7, %c0_8], %4 {strides = array<i32>} : memref<32x128xf32, #tpu.memory_space<vmem>>, vector<8x128xf32>,
    %c24_9 = arith.constant 24 : index
    %c0_10 = arith.constant 0 : index
    %8 = vector.load %arg14[%c24_9, %c0_10] : memref<32x128xf32, #tpu.memory_space<vmem>>, vector<8x128xf32>
    tpu.vector_store %arg14[%c24_9, %c0_10], %4 {strides = array<i32>} : memref<32x128xf32, #tpu.memory_space<vmem>>, vector<8x128xf32>,
    %c0_11 = arith.constant 0 : index
    %c0_12 = arith.constant 0 : index
    %9 = vector.load %arg15[%c0_11, %c0_12] : memref<32x128xf32, #tpu.memory_space<vmem>>, vector<8x128xf32>
    tpu.vector_store %arg15[%c0_11, %c0_12], %4 {strides = array<i32>} : memref<32x128xf32, #tpu.memory_space<vmem>>, vector<8x128xf32>,
    %c24_13 = arith.constant 24 : index
    %c0_14 = arith.constant 0 : index
    %10 = vector.load %arg15[%c24_13, %c0_14] : memref<32x128xf32, #tpu.memory_space<vmem>>, vector<8x128xf32>
    tpu.vector_store %arg15[%c24_13, %c0_14], %4 {strides = array<i32>} : memref<32x128xf32, #tpu.memory_space<vmem>>, vector<8x128xf32>,
    %c0_15 = arith.constant 0 : index
    %c0_16 = arith.constant 0 : index
    %11 = vector.load %arg16[%c0_15, %c0_16] : memref<32x128xf32, #tpu.memory_space<vmem>>, vector<8x128xf32>
    tpu.vector_store %arg16[%c0_15, %c0_16], %4 {strides = array<i32>} : memref<32x128xf32, #tpu.memory_space<vmem>>, vector<8x128xf32>,
    %c24_17 = arith.constant 24 : index
    %c0_18 = arith.constant 0 : index
    %12 = vector.load %arg16[%c24_17, %c0_18] : memref<32x128xf32, #tpu.memory_space<vmem>>, vector<8x128xf32>
    tpu.vector_store %arg16[%c24_17, %c0_18], %4 {strides = array<i32>} : memref<32x128xf32, #tpu.memory_space<vmem>>, vector<8x128xf32>,
    %c0_19 = arith.constant 0 : index
    %c0_20 = arith.constant 0 : index
    %13 = vector.load %arg17[%c0_19, %c0_20] : memref<32x128xf32, #tpu.memory_space<vmem>>, vector<8x128xf32>
    tpu.vector_store %arg17[%c0_19, %c0_20], %4 {strides = array<i32>} : memref<32x128xf32, #tpu.memory_space<vmem>>, vector<8x128xf32>,
    %c24_21 = arith.constant 24 : index
    %c0_22 = arith.constant 0 : index
    %14 = vector.load %arg17[%c24_21, %c0_22] : memref<32x128xf32, #tpu.memory_space<vmem>>, vector<8x128xf32>
    tpu.vector_store %arg17[%c24_21, %c0_22], %4 {strides = array<i32>} : memref<32x128xf32, #tpu.memory_space<vmem>>, vector<8x128xf32>,
    %c0_23 = arith.constant 0 : index
    %c0_24 = arith.constant 0 : index
    %15 = vector.load %arg18[%c0_23, %c0_24] : memref<32x128xf32, #tpu.memory_space<vmem>>, vector<8x128xf32>
    tpu.vector_store %arg18[%c0_23, %c0_24], %4 {strides = array<i32>} : memref<32x128xf32, #tpu.memory_space<vmem>>, vector<8x128xf32>,
    %c24_25 = arith.constant 24 : index
    %c0_26 = arith.constant 0 : index
    %16 = vector.load %arg18[%c24_25, %c0_26] : memref<32x128xf32, #tpu.memory_space<vmem>>, vector<8x128xf32>
    tpu.vector_store %arg18[%c24_25, %c0_26], %4 {strides = array<i32>} : memref<32x128xf32, #tpu.memory_space<vmem>>, vector<8x128xf32>,
    %c0_27 = arith.constant 0 : index
    %c0_28 = arith.constant 0 : index
    %17 = vector.load %arg5[%c0_27, %c0_28] : memref<16x128xf32, #tpu.memory_space<vmem>>, vector<16x128xf32>
    %c0_29 = arith.constant 0 : index
    %c0_30 = arith.constant 0 : index
    %18 = vector.load %arg6[%c0_29, %c0_30] : memref<16x128xf32, #tpu.memory_space<vmem>>, vector<16x128xf32>
    %cst_31 = arith.constant 9.99999968E-21 : f32
    %19 = vector.broadcast %cst_31 : f32 to vector<16x128xf32>
    %20 = arith.addf %18, %19 : vector<16x128xf32>
    %21 = tpu.reciprocal %20 {approx = true} : vector<16x128xf32> -> vector<16x128xf32>
    %22 = arith.mulf %20, %21 : vector<16x128xf32>
    %cst_32 = arith.constant 2.000000e+00 : f32
    %23 = vector.broadcast %cst_32 : f32 to vector<16x128xf32>
    %24 = arith.subf %23, %22 : vector<16x128xf32>
    %25 = arith.mulf %21, %24 : vector<16x128xf32>
    %26 = arith.mulf %17, %25 : vector<16x128xf32>
    %27 = arith.mulf %26, %18 : vector<16x128xf32>
    %cst_33 = arith.constant 9.99999968E-21 : f32
    %28 = vector.broadcast %cst_33 : f32 to vector<16x128xf32>
    %29 = arith.addf %26, %28 : vector<16x128xf32>
    %30 = tpu.reciprocal %29 {approx = true} : vector<16x128xf32> -> vector<16x128xf32>
    %31 = arith.mulf %29, %30 : vector<16x128xf32>
    %cst_34 = arith.constant 2.000000e+00 : f32
    %32 = vector.broadcast %cst_34 : f32 to vector<16x128xf32>
    %33 = arith.subf %32, %31 : vector<16x128xf32>
    %34 = arith.mulf %30, %33 : vector<16x128xf32>
    %35 = arith.mulf %18, %34 : vector<16x128xf32>
    %c1_i32 = arith.constant 1 : i32
    %36 = tpu.dynamic_rotate %26 by %c1_i32 dim 1 : vector<16x128xf32>, i32 -> vector<16x128xf32>
    %37 = arith.mulf %36, %1 : vector<16x128xf32>
    %c127_i32 = arith.constant 127 : i32
    %38 = tpu.dynamic_rotate %26 by %c127_i32 dim 1 : vector<16x128xf32>, i32 -> vector<16x128xf32>
    %39 = arith.mulf %38, %3 : vector<16x128xf32>
    %c1_i32_35 = arith.constant 1 : i32
    %40 = tpu.dynamic_rotate %18 by %c1_i32_35 dim 1 : vector<16x128xf32>, i32 -> vector<16x128xf32>
    %41 = arith.mulf %40, %1 : vector<16x128xf32>
    %c127_i32_36 = arith.constant 127 : i32
    %42 = tpu.dynamic_rotate %18 by %c127_i32_36 dim 1 : vector<16x128xf32>, i32 -> vector<16x128xf32>
    %43 = arith.mulf %42, %3 : vector<16x128xf32>
    %c1_i32_37 = arith.constant 1 : i32
    %44 = tpu.dynamic_rotate %27 by %c1_i32_37 dim 1 : vector<16x128xf32>, i32 -> vector<16x128xf32>
    %45 = arith.mulf %44, %1 : vector<16x128xf32>
    %c127_i32_38 = arith.constant 127 : i32
    %46 = tpu.dynamic_rotate %27 by %c127_i32_38 dim 1 : vector<16x128xf32>, i32 -> vector<16x128xf32>
    %47 = arith.mulf %46, %3 : vector<16x128xf32>
    %c1_i32_39 = arith.constant 1 : i32
    %48 = tpu.dynamic_rotate %35 by %c1_i32_39 dim 1 : vector<16x128xf32>, i32 -> vector<16x128xf32>
    %49 = arith.mulf %48, %1 : vector<16x128xf32>
    %c127_i32_40 = arith.constant 127 : i32
    %50 = tpu.dynamic_rotate %35 by %c127_i32_40 dim 1 : vector<16x128xf32>, i32 -> vector<16x128xf32>
    %51 = arith.mulf %50, %3 : vector<16x128xf32>
    %52 = arith.cmpf ogt, %27, %45 : vector<16x128xf32>
    %53 = arith.select %52, %27, %45 : vector<16x128xi1>, vector<16x128xf32>
    %54 = arith.select %52, %26, %37 : vector<16x128xi1>, vector<16x128xf32>
    %55 = arith.select %52, %18, %41 : vector<16x128xi1>, vector<16x128xf32>
    %56 = arith.cmpf ogt, %47, %53 : vector<16x128xf32>
    %57 = arith.select %56, %47, %53 : vector<16x128xi1>, vector<16x128xf32>
    %58 = arith.select %56, %39, %54 : vector<16x128xi1>, vector<16x128xf32>
    %59 = arith.select %56, %43, %55 : vector<16x128xi1>, vector<16x128xf32>
    %60 = arith.cmpf ogt, %35, %49 : vector<16x128xf32>
    %61 = arith.select %60, %35, %49 : vector<16x128xi1>, vector<16x128xf32>
    %62 = arith.select %60, %26, %37 : vector<16x128xi1>, vector<16x128xf32>
    %63 = arith.select %60, %18, %41 : vector<16x128xi1>, vector<16x128xf32>
    %64 = arith.cmpf ogt, %51, %61 : vector<16x128xf32>
    %65 = arith.select %64, %51, %61 : vector<16x128xi1>, vector<16x128xf32>
    %66 = arith.select %64, %39, %62 : vector<16x128xi1>, vector<16x128xf32>
    %67 = arith.select %64, %43, %63 : vector<16x128xi1>, vector<16x128xf32>
    %c8 = arith.constant 8 : index
    %c0_41 = arith.constant 0 : index
    %68 = vector.load %arg13[%c8, %c0_41] : memref<32x128xf32, #tpu.memory_space<vmem>>, vector<16x128xf32>
    tpu.vector_store %arg13[%c8, %c0_41], %57 {strides = array<i32>} : memref<32x128xf32, #tpu.memory_space<vmem>>, vector<16x128xf32>,
    %c8_42 = arith.constant 8 : index
    %c0_43 = arith.constant 0 : index
    %69 = vector.load %arg14[%c8_42, %c0_43] : memref<32x128xf32, #tpu.memory_space<vmem>>, vector<16x128xf32>
    tpu.vector_store %arg14[%c8_42, %c0_43], %58 {strides = array<i32>} : memref<32x128xf32, #tpu.memory_space<vmem>>, vector<16x128xf32>,
    %c8_44 = arith.constant 8 : index
    %c0_45 = arith.constant 0 : index
    %70 = vector.load %arg15[%c8_44, %c0_45] : memref<32x128xf32, #tpu.memory_space<vmem>>, vector<16x128xf32>
    tpu.vector_store %arg15[%c8_44, %c0_45], %59 {strides = array<i32>} : memref<32x128xf32, #tpu.memory_space<vmem>>, vector<16x128xf32>,
    %c8_46 = arith.constant 8 : index
    %c0_47 = arith.constant 0 : index
    %71 = vector.load %arg16[%c8_46, %c0_47] : memref<32x128xf32, #tpu.memory_space<vmem>>, vector<16x128xf32>
    tpu.vector_store %arg16[%c8_46, %c0_47], %65 {strides = array<i32>} : memref<32x128xf32, #tpu.memory_space<vmem>>, vector<16x128xf32>,
    %c8_48 = arith.constant 8 : index
    %c0_49 = arith.constant 0 : index
    %72 = vector.load %arg17[%c8_48, %c0_49] : memref<32x128xf32, #tpu.memory_space<vmem>>, vector<16x128xf32>
    tpu.vector_store %arg17[%c8_48, %c0_49], %66 {strides = array<i32>} : memref<32x128xf32, #tpu.memory_space<vmem>>, vector<16x128xf32>,
    %c8_50 = arith.constant 8 : index
    %c0_51 = arith.constant 0 : index
    %73 = vector.load %arg18[%c8_50, %c0_51] : memref<32x128xf32, #tpu.memory_space<vmem>>, vector<16x128xf32>
    tpu.vector_store %arg18[%c8_50, %c0_51], %67 {strides = array<i32>} : memref<32x128xf32, #tpu.memory_space<vmem>>, vector<16x128xf32>,
    %c7 = arith.constant 7 : index
    %c0_52 = arith.constant 0 : index
    %74 = vector.load %arg13[%c7, %c0_52] : memref<32x128xf32, #tpu.memory_space<vmem>>, vector<16x128xf32>
    %c7_53 = arith.constant 7 : index
    %c0_54 = arith.constant 0 : index
    %75 = vector.load %arg14[%c7_53, %c0_54] : memref<32x128xf32, #tpu.memory_space<vmem>>, vector<16x128xf32>
    %c7_55 = arith.constant 7 : index
    %c0_56 = arith.constant 0 : index
    %76 = vector.load %arg15[%c7_55, %c0_56] : memref<32x128xf32, #tpu.memory_space<vmem>>, vector<16x128xf32>
    %77 = arith.cmpf ogt, %57, %74 : vector<16x128xf32>
    %78 = arith.select %77, %57, %74 : vector<16x128xi1>, vector<16x128xf32>
    %79 = arith.select %77, %58, %75 : vector<16x128xi1>, vector<16x128xf32>
    %80 = arith.select %77, %59, %76 : vector<16x128xi1>, vector<16x128xf32>
    %c9 = arith.constant 9 : index
    %c0_57 = arith.constant 0 : index
    %81 = vector.load %arg13[%c9, %c0_57] : memref<32x128xf32, #tpu.memory_space<vmem>>, vector<16x128xf32>
    %c9_58 = arith.constant 9 : index
    %c0_59 = arith.constant 0 : index
    %82 = vector.load %arg14[%c9_58, %c0_59] : memref<32x128xf32, #tpu.memory_space<vmem>>, vector<16x128xf32>
    %c9_60 = arith.constant 9 : index
    %c0_61 = arith.constant 0 : index
    %83 = vector.load %arg15[%c9_60, %c0_61] : memref<32x128xf32, #tpu.memory_space<vmem>>, vector<16x128xf32>
    %84 = arith.cmpf ogt, %81, %78 : vector<16x128xf32>
    %85 = arith.select %84, %82, %79 : vector<16x128xi1>, vector<16x128xf32>
    %86 = arith.select %84, %83, %80 : vector<16x128xi1>, vector<16x128xf32>
    %c7_62 = arith.constant 7 : index
    %c0_63 = arith.constant 0 : index
    %87 = vector.load %arg16[%c7_62, %c0_63] : memref<32x128xf32, #tpu.memory_space<vmem>>, vector<16x128xf32>
    %c7_64 = arith.constant 7 : index
    %c0_65 = arith.constant 0 : index
    %88 = vector.load %arg17[%c7_64, %c0_65] : memref<32x128xf32, #tpu.memory_space<vmem>>, vector<16x128xf32>
    %c7_66 = arith.constant 7 : index
    %c0_67 = arith.constant 0 : index
    %89 = vector.load %arg18[%c7_66, %c0_67] : memref<32x128xf32, #tpu.memory_space<vmem>>, vector<16x128xf32>
    %90 = arith.cmpf ogt, %65, %87 : vector<16x128xf32>
    %91 = arith.select %90, %65, %87 : vector<16x128xi1>, vector<16x128xf32>
    %92 = arith.select %90, %66, %88 : vector<16x128xi1>, vector<16x128xf32>
    %93 = arith.select %90, %67, %89 : vector<16x128xi1>, vector<16x128xf32>
    %c9_68 = arith.constant 9 : index
    %c0_69 = arith.constant 0 : index
    %94 = vector.load %arg16[%c9_68, %c0_69] : memref<32x128xf32, #tpu.memory_space<vmem>>, vector<16x128xf32>
    %c9_70 = arith.constant 9 : index
    %c0_71 = arith.constant 0 : index
    %95 = vector.load %arg17[%c9_70, %c0_71] : memref<32x128xf32, #tpu.memory_space<vmem>>, vector<16x128xf32>
    %c9_72 = arith.constant 9 : index
    %c0_73 = arith.constant 0 : index
    %96 = vector.load %arg18[%c9_72, %c0_73] : memref<32x128xf32, #tpu.memory_space<vmem>>, vector<16x128xf32>
    %97 = arith.cmpf ogt, %94, %91 : vector<16x128xf32>
    %98 = arith.select %97, %95, %92 : vector<16x128xi1>, vector<16x128xf32>
    %99 = arith.select %97, %96, %93 : vector<16x128xi1>, vector<16x128xf32>
    %c0_74 = arith.constant 0 : index
    %100 = memref.load %arg3[%c0_74] : memref<2xf32, #tpu.memory_space<smem>>
    %c1_75 = arith.constant 1 : index
    %101 = memref.load %arg3[%c1_75] : memref<2xf32, #tpu.memory_space<smem>>
    %cst_76 = arith.constant 9.99999968E-21 : f32
    %102 = vector.broadcast %cst_76 : f32 to vector<16x128xf32>
    %103 = arith.addf %98, %102 : vector<16x128xf32>
    %cst_77 = arith.constant 9.99999968E-21 : f32
    %104 = vector.broadcast %cst_77 : f32 to vector<16x128xf32>
    %105 = arith.addf %85, %104 : vector<16x128xf32>
    %106 = tpu.reciprocal %105 {approx = true} : vector<16x128xf32> -> vector<16x128xf32>
    %107 = arith.mulf %105, %106 : vector<16x128xf32>
    %cst_78 = arith.constant 2.000000e+00 : f32
    %108 = vector.broadcast %cst_78 : f32 to vector<16x128xf32>
    %109 = arith.subf %108, %107 : vector<16x128xf32>
    %110 = arith.mulf %106, %109 : vector<16x128xf32>
    %111 = arith.mulf %103, %110 : vector<16x128xf32>
    %112 = math.log %111 : vector<16x128xf32>
    %113 = vector.broadcast %101 : f32 to vector<16x128xf32>
    %114 = arith.mulf %113, %112 : vector<16x128xf32>
    %115 = math.exp %114 : vector<16x128xf32>
    %116 = arith.mulf %86, %99 : vector<16x128xf32>
    %cst_79 = arith.constant 1.000000e+00 : f32
    %117 = arith.subf %cst_79, %100 : f32
    %c0_80 = arith.constant 0 : index
    %c0_81 = arith.constant 0 : index
    %118 = vector.load %arg8[%c0_80, %c0_81] : memref<16x128xf32, #tpu.memory_space<vmem>>, vector<16x128xf32>
    %119 = vector.broadcast %100 : f32 to vector<16x128xf32>
    %120 = arith.mulf %118, %119 : vector<16x128xf32>
    %121 = vector.broadcast %117 : f32 to vector<16x128xf32>
    %122 = arith.mulf %116, %121 : vector<16x128xf32>
    %123 = arith.addf %120, %122 : vector<16x128xf32>
    %c0_82 = arith.constant 0 : index
    %c0_83 = arith.constant 0 : index
    %124 = vector.load %arg7[%c0_82, %c0_83] : memref<16x128xf32, #tpu.memory_space<vmem>>, vector<16x128xf32>
    %125 = vector.broadcast %100 : f32 to vector<16x128xf32>
    %126 = arith.mulf %124, %125 : vector<16x128xf32>
    %127 = arith.mulf %115, %116 : vector<16x128xf32>
    %128 = vector.broadcast %117 : f32 to vector<16x128xf32>
    %129 = arith.mulf %127, %128 : vector<16x128xf32>
    %130 = arith.addf %126, %129 : vector<16x128xf32>
    %c1_i32_84 = arith.constant 1 : i32
    %131 = tpu.dynamic_rotate %123 by %c1_i32_84 dim 1 : vector<16x128xf32>, i32 -> vector<16x128xf32>
    %132 = arith.mulf %131, %1 : vector<16x128xf32>
    %c127_i32_85 = arith.constant 127 : i32
    %133 = tpu.dynamic_rotate %123 by %c127_i32_85 dim 1 : vector<16x128xf32>, i32 -> vector<16x128xf32>
    %134 = arith.mulf %133, %3 : vector<16x128xf32>
    %c0_86 = arith.constant 0 : index
    %135 = memref.load %arg2[%c0_86] : memref<9xf32, #tpu.memory_space<smem>>
    %136 = vector.broadcast %135 : f32 to vector<16x128xf32>
    %137 = arith.mulf %136, %132 : vector<16x128xf32>
    %c1_87 = arith.constant 1 : index
    %138 = memref.load %arg2[%c1_87] : memref<9xf32, #tpu.memory_space<smem>>
    %139 = vector.broadcast %138 : f32 to vector<16x128xf32>
    %140 = arith.mulf %139, %123 : vector<16x128xf32>
    %141 = arith.addf %137, %140 : vector<16x128xf32>
    %c2 = arith.constant 2 : index
    %142 = memref.load %arg2[%c2] : memref<9xf32, #tpu.memory_space<smem>>
    %143 = vector.broadcast %142 : f32 to vector<16x128xf32>
    %144 = arith.mulf %143, %134 : vector<16x128xf32>
    %145 = arith.addf %141, %144 : vector<16x128xf32>
    %c8_88 = arith.constant 8 : index
    %c0_89 = arith.constant 0 : index
    %146 = vector.load %arg13[%c8_88, %c0_89] : memref<32x128xf32, #tpu.memory_space<vmem>>, vector<16x128xf32>
    tpu.vector_store %arg13[%c8_88, %c0_89], %145 {strides = array<i32>} : memref<32x128xf32, #tpu.memory_space<vmem>>, vector<16x128xf32>,
    %c6 = arith.constant 6 : index
    %147 = memref.load %arg2[%c6] : memref<9xf32, #tpu.memory_space<smem>>
    %148 = vector.broadcast %147 : f32 to vector<16x128xf32>
    %149 = arith.mulf %148, %132 : vector<16x128xf32>
    %c7_90 = arith.constant 7 : index
    %150 = memref.load %arg2[%c7_90] : memref<9xf32, #tpu.memory_space<smem>>
    %151 = vector.broadcast %150 : f32 to vector<16x128xf32>
    %152 = arith.mulf %151, %123 : vector<16x128xf32>
    %153 = arith.addf %149, %152 : vector<16x128xf32>
    %c8_91 = arith.constant 8 : index
    %154 = memref.load %arg2[%c8_91] : memref<9xf32, #tpu.memory_space<smem>>
    %155 = vector.broadcast %154 : f32 to vector<16x128xf32>
    %156 = arith.mulf %155, %134 : vector<16x128xf32>
    %157 = arith.addf %153, %156 : vector<16x128xf32>
    %c8_92 = arith.constant 8 : index
    %c0_93 = arith.constant 0 : index
    %158 = vector.load %arg14[%c8_92, %c0_93] : memref<32x128xf32, #tpu.memory_space<vmem>>, vector<16x128xf32>
    tpu.vector_store %arg14[%c8_92, %c0_93], %157 {strides = array<i32>} : memref<32x128xf32, #tpu.memory_space<vmem>>, vector<16x128xf32>,
    %c7_94 = arith.constant 7 : index
    %c0_95 = arith.constant 0 : index
    %159 = vector.load %arg13[%c7_94, %c0_95] : memref<32x128xf32, #tpu.memory_space<vmem>>, vector<16x128xf32>
    %c3 = arith.constant 3 : index
    %160 = memref.load %arg2[%c3] : memref<9xf32, #tpu.memory_space<smem>>
    %161 = vector.broadcast %160 : f32 to vector<16x128xf32>
    %162 = arith.mulf %161, %132 : vector<16x128xf32>
    %c4 = arith.constant 4 : index
    %163 = memref.load %arg2[%c4] : memref<9xf32, #tpu.memory_space<smem>>
    %164 = vector.broadcast %163 : f32 to vector<16x128xf32>
    %165 = arith.mulf %164, %123 : vector<16x128xf32>
    %166 = arith.addf %162, %165 : vector<16x128xf32>
    %c5 = arith.constant 5 : index
    %167 = memref.load %arg2[%c5] : memref<9xf32, #tpu.memory_space<smem>>
    %168 = vector.broadcast %167 : f32 to vector<16x128xf32>
    %169 = arith.mulf %168, %134 : vector<16x128xf32>
    %170 = arith.addf %166, %169 : vector<16x128xf32>
    %171 = arith.addf %159, %170 : vector<16x128xf32>
    %c9_96 = arith.constant 9 : index
    %c0_97 = arith.constant 0 : index
    %172 = vector.load %arg14[%c9_96, %c0_97] : memref<32x128xf32, #tpu.memory_space<vmem>>, vector<16x128xf32>
    %173 = arith.addf %171, %172 : vector<16x128xf32>
    %c1_i32_98 = arith.constant 1 : i32
    %174 = tpu.dynamic_rotate %130 by %c1_i32_98 dim 1 : vector<16x128xf32>, i32 -> vector<16x128xf32>
    %175 = arith.mulf %174, %1 : vector<16x128xf32>
    %c127_i32_99 = arith.constant 127 : i32
    %176 = tpu.dynamic_rotate %130 by %c127_i32_99 dim 1 : vector<16x128xf32>, i32 -> vector<16x128xf32>
    %177 = arith.mulf %176, %3 : vector<16x128xf32>
    %c0_100 = arith.constant 0 : index
    %178 = memref.load %arg2[%c0_100] : memref<9xf32, #tpu.memory_space<smem>>
    %179 = vector.broadcast %178 : f32 to vector<16x128xf32>
    %180 = arith.mulf %179, %175 : vector<16x128xf32>
    %c1_101 = arith.constant 1 : index
    %181 = memref.load %arg2[%c1_101] : memref<9xf32, #tpu.memory_space<smem>>
    %182 = vector.broadcast %181 : f32 to vector<16x128xf32>
    %183 = arith.mulf %182, %130 : vector<16x128xf32>
    %184 = arith.addf %180, %183 : vector<16x128xf32>
    %c2_102 = arith.constant 2 : index
    %185 = memref.load %arg2[%c2_102] : memref<9xf32, #tpu.memory_space<smem>>
    %186 = vector.broadcast %185 : f32 to vector<16x128xf32>
    %187 = arith.mulf %186, %177 : vector<16x128xf32>
    %188 = arith.addf %184, %187 : vector<16x128xf32>
    %c8_103 = arith.constant 8 : index
    %c0_104 = arith.constant 0 : index
    %189 = vector.load %arg15[%c8_103, %c0_104] : memref<32x128xf32, #tpu.memory_space<vmem>>, vector<16x128xf32>
    tpu.vector_store %arg15[%c8_103, %c0_104], %188 {strides = array<i32>} : memref<32x128xf32, #tpu.memory_space<vmem>>, vector<16x128xf32>,
    %c6_105 = arith.constant 6 : index
    %190 = memref.load %arg2[%c6_105] : memref<9xf32, #tpu.memory_space<smem>>
    %191 = vector.broadcast %190 : f32 to vector<16x128xf32>
    %192 = arith.mulf %191, %175 : vector<16x128xf32>
    %c7_106 = arith.constant 7 : index
    %193 = memref.load %arg2[%c7_106] : memref<9xf32, #tpu.memory_space<smem>>
    %194 = vector.broadcast %193 : f32 to vector<16x128xf32>
    %195 = arith.mulf %194, %130 : vector<16x128xf32>
    %196 = arith.addf %192, %195 : vector<16x128xf32>
    %c8_107 = arith.constant 8 : index
    %197 = memref.load %arg2[%c8_107] : memref<9xf32, #tpu.memory_space<smem>>
    %198 = vector.broadcast %197 : f32 to vector<16x128xf32>
    %199 = arith.mulf %198, %177 : vector<16x128xf32>
    %200 = arith.addf %196, %199 : vector<16x128xf32>
    %c8_108 = arith.constant 8 : index
    %c0_109 = arith.constant 0 : index
    %201 = vector.load %arg16[%c8_108, %c0_109] : memref<32x128xf32, #tpu.memory_space<vmem>>, vector<16x128xf32>
    tpu.vector_store %arg16[%c8_108, %c0_109], %200 {strides = array<i32>} : memref<32x128xf32, #tpu.memory_space<vmem>>, vector<16x128xf32>,
    %c7_110 = arith.constant 7 : index
    %c0_111 = arith.constant 0 : index
    %202 = vector.load %arg15[%c7_110, %c0_111] : memref<32x128xf32, #tpu.memory_space<vmem>>, vector<16x128xf32>
    %c3_112 = arith.constant 3 : index
    %203 = memref.load %arg2[%c3_112] : memref<9xf32, #tpu.memory_space<smem>>
    %204 = vector.broadcast %203 : f32 to vector<16x128xf32>
    %205 = arith.mulf %204, %175 : vector<16x128xf32>
    %c4_113 = arith.constant 4 : index
    %206 = memref.load %arg2[%c4_113] : memref<9xf32, #tpu.memory_space<smem>>
    %207 = vector.broadcast %206 : f32 to vector<16x128xf32>
    %208 = arith.mulf %207, %130 : vector<16x128xf32>
    %209 = arith.addf %205, %208 : vector<16x128xf32>
    %c5_114 = arith.constant 5 : index
    %210 = memref.load %arg2[%c5_114] : memref<9xf32, #tpu.memory_space<smem>>
    %211 = vector.broadcast %210 : f32 to vector<16x128xf32>
    %212 = arith.mulf %211, %177 : vector<16x128xf32>
    %213 = arith.addf %209, %212 : vector<16x128xf32>
    %214 = arith.addf %202, %213 : vector<16x128xf32>
    %c9_115 = arith.constant 9 : index
    %c0_116 = arith.constant 0 : index
    %215 = vector.load %arg16[%c9_115, %c0_116] : memref<32x128xf32, #tpu.memory_space<vmem>>, vector<16x128xf32>
    %216 = arith.addf %214, %215 : vector<16x128xf32>
    %cst_117 = arith.constant 9.99999968E-21 : f32
    %217 = vector.broadcast %cst_117 : f32 to vector<16x128xf32>
    %218 = arith.addf %173, %217 : vector<16x128xf32>
    %219 = tpu.reciprocal %218 {approx = true} : vector<16x128xf32> -> vector<16x128xf32>
    %220 = arith.mulf %218, %219 : vector<16x128xf32>
    %cst_118 = arith.constant 2.000000e+00 : f32
    %221 = vector.broadcast %cst_118 : f32 to vector<16x128xf32>
    %222 = arith.subf %221, %220 : vector<16x128xf32>
    %223 = arith.mulf %219, %222 : vector<16x128xf32>
    %224 = arith.mulf %216, %223 : vector<16x128xf32>
    %c1_i32_119 = arith.constant 1 : i32
    %225 = tpu.dynamic_rotate %224 by %c1_i32_119 dim 1 : vector<16x128xf32>, i32 -> vector<16x128xf32>
    %226 = arith.mulf %225, %1 : vector<16x128xf32>
    %c127_i32_120 = arith.constant 127 : i32
    %227 = tpu.dynamic_rotate %224 by %c127_i32_120 dim 1 : vector<16x128xf32>, i32 -> vector<16x128xf32>
    %228 = arith.mulf %227, %3 : vector<16x128xf32>
    %c0_121 = arith.constant 0 : index
    %229 = memref.load %arg1[%c0_121] : memref<9xf32, #tpu.memory_space<smem>>
    %230 = vector.broadcast %229 : f32 to vector<16x128xf32>
    %231 = arith.mulf %230, %226 : vector<16x128xf32>
    %c1_122 = arith.constant 1 : index
    %232 = memref.load %arg1[%c1_122] : memref<9xf32, #tpu.memory_space<smem>>
    %233 = vector.broadcast %232 : f32 to vector<16x128xf32>
    %234 = arith.mulf %233, %224 : vector<16x128xf32>
    %235 = arith.addf %231, %234 : vector<16x128xf32>
    %c2_123 = arith.constant 2 : index
    %236 = memref.load %arg1[%c2_123] : memref<9xf32, #tpu.memory_space<smem>>
    %237 = vector.broadcast %236 : f32 to vector<16x128xf32>
    %238 = arith.mulf %237, %228 : vector<16x128xf32>
    %239 = arith.addf %235, %238 : vector<16x128xf32>
    %c8_124 = arith.constant 8 : index
    %c0_125 = arith.constant 0 : index
    %240 = vector.load %arg17[%c8_124, %c0_125] : memref<32x128xf32, #tpu.memory_space<vmem>>, vector<16x128xf32>
    tpu.vector_store %arg17[%c8_124, %c0_125], %239 {strides = array<i32>} : memref<32x128xf32, #tpu.memory_space<vmem>>, vector<16x128xf32>,
    %c6_126 = arith.constant 6 : index
    %241 = memref.load %arg1[%c6_126] : memref<9xf32, #tpu.memory_space<smem>>
    %242 = vector.broadcast %241 : f32 to vector<16x128xf32>
    %243 = arith.mulf %242, %226 : vector<16x128xf32>
    %c7_127 = arith.constant 7 : index
    %244 = memref.load %arg1[%c7_127] : memref<9xf32, #tpu.memory_space<smem>>
    %245 = vector.broadcast %244 : f32 to vector<16x128xf32>
    %246 = arith.mulf %245, %224 : vector<16x128xf32>
    %247 = arith.addf %243, %246 : vector<16x128xf32>
    %c8_128 = arith.constant 8 : index
    %248 = memref.load %arg1[%c8_128] : memref<9xf32, #tpu.memory_space<smem>>
    %249 = vector.broadcast %248 : f32 to vector<16x128xf32>
    %250 = arith.mulf %249, %228 : vector<16x128xf32>
    %251 = arith.addf %247, %250 : vector<16x128xf32>
    %c8_129 = arith.constant 8 : index
    %c0_130 = arith.constant 0 : index
    %252 = vector.load %arg18[%c8_129, %c0_130] : memref<32x128xf32, #tpu.memory_space<vmem>>, vector<16x128xf32>
    tpu.vector_store %arg18[%c8_129, %c0_130], %251 {strides = array<i32>} : memref<32x128xf32, #tpu.memory_space<vmem>>, vector<16x128xf32>,
    %c7_131 = arith.constant 7 : index
    %c0_132 = arith.constant 0 : index
    %253 = vector.load %arg17[%c7_131, %c0_132] : memref<32x128xf32, #tpu.memory_space<vmem>>, vector<16x128xf32>
    %c3_133 = arith.constant 3 : index
    %254 = memref.load %arg1[%c3_133] : memref<9xf32, #tpu.memory_space<smem>>
    %255 = vector.broadcast %254 : f32 to vector<16x128xf32>
    %256 = arith.mulf %255, %226 : vector<16x128xf32>
    %c5_134 = arith.constant 5 : index
    %257 = memref.load %arg1[%c5_134] : memref<9xf32, #tpu.memory_space<smem>>
    %258 = vector.broadcast %257 : f32 to vector<16x128xf32>
    %259 = arith.mulf %258, %228 : vector<16x128xf32>
    %260 = arith.addf %256, %259 : vector<16x128xf32>
    %261 = arith.addf %253, %260 : vector<16x128xf32>
    %c9_135 = arith.constant 9 : index
    %c0_136 = arith.constant 0 : index
    %262 = vector.load %arg18[%c9_135, %c0_136] : memref<32x128xf32, #tpu.memory_space<vmem>>, vector<16x128xf32>
    %263 = arith.addf %261, %262 : vector<16x128xf32>
    %264 = arith.mulf %224, %17 : vector<16x128xf32>
    %c1_i32_137 = arith.constant 1 : i32
    %265 = tpu.dynamic_rotate %264 by %c1_i32_137 dim 1 : vector<16x128xf32>, i32 -> vector<16x128xf32>
    %266 = arith.mulf %265, %1 : vector<16x128xf32>
    %c127_i32_138 = arith.constant 127 : i32
    %267 = tpu.dynamic_rotate %264 by %c127_i32_138 dim 1 : vector<16x128xf32>, i32 -> vector<16x128xf32>
    %268 = arith.mulf %267, %3 : vector<16x128xf32>
    %c0_139 = arith.constant 0 : index
    %269 = memref.load %arg1[%c0_139] : memref<9xf32, #tpu.memory_space<smem>>
    %270 = vector.broadcast %269 : f32 to vector<16x128xf32>
    %271 = arith.mulf %270, %266 : vector<16x128xf32>
    %c1_140 = arith.constant 1 : index
    %272 = memref.load %arg1[%c1_140] : memref<9xf32, #tpu.memory_space<smem>>
    %273 = vector.broadcast %272 : f32 to vector<16x128xf32>
    %274 = arith.mulf %273, %264 : vector<16x128xf32>
    %275 = arith.addf %271, %274 : vector<16x128xf32>
    %c2_141 = arith.constant 2 : index
    %276 = memref.load %arg1[%c2_141] : memref<9xf32, #tpu.memory_space<smem>>
    %277 = vector.broadcast %276 : f32 to vector<16x128xf32>
    %278 = arith.mulf %277, %268 : vector<16x128xf32>
    %279 = arith.addf %275, %278 : vector<16x128xf32>
    %c8_142 = arith.constant 8 : index
    %c0_143 = arith.constant 0 : index
    %280 = vector.load %arg13[%c8_142, %c0_143] : memref<32x128xf32, #tpu.memory_space<vmem>>, vector<16x128xf32>
    tpu.vector_store %arg13[%c8_142, %c0_143], %279 {strides = array<i32>} : memref<32x128xf32, #tpu.memory_space<vmem>>, vector<16x128xf32>,
    %c6_144 = arith.constant 6 : index
    %281 = memref.load %arg1[%c6_144] : memref<9xf32, #tpu.memory_space<smem>>
    %282 = vector.broadcast %281 : f32 to vector<16x128xf32>
    %283 = arith.mulf %282, %266 : vector<16x128xf32>
    %c7_145 = arith.constant 7 : index
    %284 = memref.load %arg1[%c7_145] : memref<9xf32, #tpu.memory_space<smem>>
    %285 = vector.broadcast %284 : f32 to vector<16x128xf32>
    %286 = arith.mulf %285, %264 : vector<16x128xf32>
    %287 = arith.addf %283, %286 : vector<16x128xf32>
    %c8_146 = arith.constant 8 : index
    %288 = memref.load %arg1[%c8_146] : memref<9xf32, #tpu.memory_space<smem>>
    %289 = vector.broadcast %288 : f32 to vector<16x128xf32>
    %290 = arith.mulf %289, %268 : vector<16x128xf32>
    %291 = arith.addf %287, %290 : vector<16x128xf32>
    %c8_147 = arith.constant 8 : index
    %c0_148 = arith.constant 0 : index
    %292 = vector.load %arg14[%c8_147, %c0_148] : memref<32x128xf32, #tpu.memory_space<vmem>>, vector<16x128xf32>
    tpu.vector_store %arg14[%c8_147, %c0_148], %291 {strides = array<i32>} : memref<32x128xf32, #tpu.memory_space<vmem>>, vector<16x128xf32>,
    %c7_149 = arith.constant 7 : index
    %c0_150 = arith.constant 0 : index
    %293 = vector.load %arg13[%c7_149, %c0_150] : memref<32x128xf32, #tpu.memory_space<vmem>>, vector<16x128xf32>
    %c3_151 = arith.constant 3 : index
    %294 = memref.load %arg1[%c3_151] : memref<9xf32, #tpu.memory_space<smem>>
    %295 = vector.broadcast %294 : f32 to vector<16x128xf32>
    %296 = arith.mulf %295, %266 : vector<16x128xf32>
    %c5_152 = arith.constant 5 : index
    %297 = memref.load %arg1[%c5_152] : memref<9xf32, #tpu.memory_space<smem>>
    %298 = vector.broadcast %297 : f32 to vector<16x128xf32>
    %299 = arith.mulf %298, %268 : vector<16x128xf32>
    %300 = arith.addf %296, %299 : vector<16x128xf32>
    %301 = arith.addf %293, %300 : vector<16x128xf32>
    %c9_153 = arith.constant 9 : index
    %c0_154 = arith.constant 0 : index
    %302 = vector.load %arg14[%c9_153, %c0_154] : memref<32x128xf32, #tpu.memory_space<vmem>>, vector<16x128xf32>
    %303 = arith.addf %301, %302 : vector<16x128xf32>
    %304 = arith.mulf %224, %18 : vector<16x128xf32>
    %c1_i32_155 = arith.constant 1 : i32
    %305 = tpu.dynamic_rotate %304 by %c1_i32_155 dim 1 : vector<16x128xf32>, i32 -> vector<16x128xf32>
    %306 = arith.mulf %305, %1 : vector<16x128xf32>
    %c127_i32_156 = arith.constant 127 : i32
    %307 = tpu.dynamic_rotate %304 by %c127_i32_156 dim 1 : vector<16x128xf32>, i32 -> vector<16x128xf32>
    %308 = arith.mulf %307, %3 : vector<16x128xf32>
    %c0_157 = arith.constant 0 : index
    %309 = memref.load %arg1[%c0_157] : memref<9xf32, #tpu.memory_space<smem>>
    %310 = vector.broadcast %309 : f32 to vector<16x128xf32>
    %311 = arith.mulf %310, %306 : vector<16x128xf32>
    %c1_158 = arith.constant 1 : index
    %312 = memref.load %arg1[%c1_158] : memref<9xf32, #tpu.memory_space<smem>>
    %313 = vector.broadcast %312 : f32 to vector<16x128xf32>
    %314 = arith.mulf %313, %304 : vector<16x128xf32>
    %315 = arith.addf %311, %314 : vector<16x128xf32>
    %c2_159 = arith.constant 2 : index
    %316 = memref.load %arg1[%c2_159] : memref<9xf32, #tpu.memory_space<smem>>
    %317 = vector.broadcast %316 : f32 to vector<16x128xf32>
    %318 = arith.mulf %317, %308 : vector<16x128xf32>
    %319 = arith.addf %315, %318 : vector<16x128xf32>
    %c8_160 = arith.constant 8 : index
    %c0_161 = arith.constant 0 : index
    %320 = vector.load %arg15[%c8_160, %c0_161] : memref<32x128xf32, #tpu.memory_space<vmem>>, vector<16x128xf32>
    tpu.vector_store %arg15[%c8_160, %c0_161], %319 {strides = array<i32>} : memref<32x128xf32, #tpu.memory_space<vmem>>, vector<16x128xf32>,
    %c6_162 = arith.constant 6 : index
    %321 = memref.load %arg1[%c6_162] : memref<9xf32, #tpu.memory_space<smem>>
    %322 = vector.broadcast %321 : f32 to vector<16x128xf32>
    %323 = arith.mulf %322, %306 : vector<16x128xf32>
    %c7_163 = arith.constant 7 : index
    %324 = memref.load %arg1[%c7_163] : memref<9xf32, #tpu.memory_space<smem>>
    %325 = vector.broadcast %324 : f32 to vector<16x128xf32>
    %326 = arith.mulf %325, %304 : vector<16x128xf32>
    %327 = arith.addf %323, %326 : vector<16x128xf32>
    %c8_164 = arith.constant 8 : index
    %328 = memref.load %arg1[%c8_164] : memref<9xf32, #tpu.memory_space<smem>>
    %329 = vector.broadcast %328 : f32 to vector<16x128xf32>
    %330 = arith.mulf %329, %308 : vector<16x128xf32>
    %331 = arith.addf %327, %330 : vector<16x128xf32>
    %c8_165 = arith.constant 8 : index
    %c0_166 = arith.constant 0 : index
    %332 = vector.load %arg16[%c8_165, %c0_166] : memref<32x128xf32, #tpu.memory_space<vmem>>, vector<16x128xf32>
    tpu.vector_store %arg16[%c8_165, %c0_166], %331 {strides = array<i32>} : memref<32x128xf32, #tpu.memory_space<vmem>>, vector<16x128xf32>,
    %c7_167 = arith.constant 7 : index
    %c0_168 = arith.constant 0 : index
    %333 = vector.load %arg15[%c7_167, %c0_168] : memref<32x128xf32, #tpu.memory_space<vmem>>, vector<16x128xf32>
    %c3_169 = arith.constant 3 : index
    %334 = memref.load %arg1[%c3_169] : memref<9xf32, #tpu.memory_space<smem>>
    %335 = vector.broadcast %334 : f32 to vector<16x128xf32>
    %336 = arith.mulf %335, %306 : vector<16x128xf32>
    %c5_170 = arith.constant 5 : index
    %337 = memref.load %arg1[%c5_170] : memref<9xf32, #tpu.memory_space<smem>>
    %338 = vector.broadcast %337 : f32 to vector<16x128xf32>
    %339 = arith.mulf %338, %308 : vector<16x128xf32>
    %340 = arith.addf %336, %339 : vector<16x128xf32>
    %341 = arith.addf %333, %340 : vector<16x128xf32>
    %c9_171 = arith.constant 9 : index
    %c0_172 = arith.constant 0 : index
    %342 = vector.load %arg16[%c9_171, %c0_172] : memref<32x128xf32, #tpu.memory_space<vmem>>, vector<16x128xf32>
    %343 = arith.addf %341, %342 : vector<16x128xf32>
    %c4_173 = arith.constant 4 : index
    %344 = memref.load %arg1[%c4_173] : memref<9xf32, #tpu.memory_space<smem>>
    %345 = arith.mulf %224, %263 : vector<16x128xf32>
    %346 = vector.broadcast %344 : f32 to vector<16x128xf32>
    %347 = arith.addf %346, %345 : vector<16x128xf32>
    %cst_174 = arith.constant 9.99999968E-21 : f32
    %348 = vector.broadcast %cst_174 : f32 to vector<16x128xf32>
    %349 = arith.addf %347, %348 : vector<16x128xf32>
    %350 = tpu.reciprocal %349 {approx = true} : vector<16x128xf32> -> vector<16x128xf32>
    %351 = arith.mulf %349, %350 : vector<16x128xf32>
    %cst_175 = arith.constant 2.000000e+00 : f32
    %352 = vector.broadcast %cst_175 : f32 to vector<16x128xf32>
    %353 = arith.subf %352, %351 : vector<16x128xf32>
    %354 = arith.mulf %350, %353 : vector<16x128xf32>
    %355 = vector.broadcast %344 : f32 to vector<16x128xf32>
    %356 = arith.mulf %355, %17 : vector<16x128xf32>
    %357 = arith.mulf %224, %303 : vector<16x128xf32>
    %358 = arith.addf %356, %357 : vector<16x128xf32>
    %359 = arith.mulf %358, %354 : vector<16x128xf32>
    %c0_176 = arith.constant 0 : index
    %c0_177 = arith.constant 0 : index
    %360 = vector.load %arg9[%c0_176, %c0_177] : memref<16x128xf32, #tpu.memory_space<vmem>>, vector<16x128xf32>
    tpu.vector_store %arg9[%c0_176, %c0_177], %359 {strides = array<i32>} : memref<16x128xf32, #tpu.memory_space<vmem>>, vector<16x128xf32>,
    %361 = vector.broadcast %344 : f32 to vector<16x128xf32>
    %362 = arith.mulf %361, %18 : vector<16x128xf32>
    %363 = arith.mulf %224, %343 : vector<16x128xf32>
    %364 = arith.addf %362, %363 : vector<16x128xf32>
    %365 = arith.mulf %364, %354 : vector<16x128xf32>
    %c0_178 = arith.constant 0 : index
    %c0_179 = arith.constant 0 : index
    %366 = vector.load %arg10[%c0_178, %c0_179] : memref<16x128xf32, #tpu.memory_space<vmem>>, vector<16x128xf32>
    tpu.vector_store %arg10[%c0_178, %c0_179], %365 {strides = array<i32>} : memref<16x128xf32, #tpu.memory_space<vmem>>, vector<16x128xf32>,
    %c0_180 = arith.constant 0 : index
    %c0_181 = arith.constant 0 : index
    %367 = vector.load %arg11[%c0_180, %c0_181] : memref<16x128xf32, #tpu.memory_space<vmem>>, vector<16x128xf32>
    tpu.vector_store %arg11[%c0_180, %c0_181], %216 {strides = array<i32>} : memref<16x128xf32, #tpu.memory_space<vmem>>, vector<16x128xf32>,
    %c0_182 = arith.constant 0 : index
    %c0_183 = arith.constant 0 : index
    %368 = vector.load %arg12[%c0_182, %c0_183] : memref<16x128xf32, #tpu.memory_space<vmem>>, vector<16x128xf32>
    tpu.vector_store %arg12[%c0_182, %c0_183], %173 {strides = array<i32>} : memref<16x128xf32, #tpu.memory_space<vmem>>, vector<16x128xf32>,
    return
  }
  func.func @transform_0(%arg0: i32) -> i32 {
    %c0_i32 = arith.constant 0 : i32
    %c0_i32_0 = arith.constant 0 : i32
    return %c0_i32 : i32
  }
  func.func @transform_1(%arg0: i32) -> i32 {
    %c0_i32 = arith.constant 0 : i32
    %c0_i32_0 = arith.constant 0 : i32
    return %c0_i32 : i32
  }
  func.func @transform_2(%arg0: i32) -> i32 {
    %c0_i32 = arith.constant 0 : i32
    %c0_i32_0 = arith.constant 0 : i32
    return %c0_i32 : i32
  }
  func.func @transform_3(%arg0: i32) -> (i32, i32, i32) {
    %c0_i32 = arith.constant 0 : i32
    %c0_i32_0 = arith.constant 0 : i32
    %c0_i32_1 = arith.constant 0 : i32
    %c0_i32_2 = arith.constant 0 : i32
    return %c0_i32, %c0_i32_0, %c0_i32_1 : i32, i32, i32
  }
  func.func @transform_4(%arg0: i32) -> (i32, i32) {
    %c0_i32 = arith.constant 0 : i32
    %c0_i32_0 = arith.constant 0 : i32
    return %c0_i32, %arg0 : i32, i32
  }
  func.func @transform_5(%arg0: i32) -> (i32, i32) {
    %c0_i32 = arith.constant 0 : i32
    %c0_i32_0 = arith.constant 0 : i32
    return %c0_i32, %arg0 : i32, i32
  }
  func.func @transform_6(%arg0: i32) -> (i32, i32) {
    %c0_i32 = arith.constant 0 : i32
    %c0_i32_0 = arith.constant 0 : i32
    return %c0_i32, %arg0 : i32, i32
  }
  func.func @transform_7(%arg0: i32) -> (i32, i32) {
    %c0_i32 = arith.constant 0 : i32
    %c0_i32_0 = arith.constant 0 : i32
    return %c0_i32, %arg0 : i32, i32
  }
  func.func @transform_8(%arg0: i32) -> (i32, i32) {
    %c0_i32 = arith.constant 0 : i32
    %c0_i32_0 = arith.constant 0 : i32
    return %c0_i32, %arg0 : i32, i32
  }
  func.func @transform_9(%arg0: i32) -> (i32, i32) {
    %c0_i32 = arith.constant 0 : i32
    %c0_i32_0 = arith.constant 0 : i32
    return %c0_i32, %arg0 : i32, i32
  }
  func.func @transform_10(%arg0: i32) -> (i32, i32) {
    %c0_i32 = arith.constant 0 : i32
    %c0_i32_0 = arith.constant 0 : i32
    return %c0_i32, %arg0 : i32, i32
  }
  func.func @transform_11(%arg0: i32) -> (i32, i32) {
    %c0_i32 = arith.constant 0 : i32
    %c0_i32_0 = arith.constant 0 : i32
    return %c0_i32, %arg0 : i32, i32
  }
}

</mosaic_0001>

<llo_original>
// kernel: usnc_conv_forward.1
$region0: #{usnc_conv_forward.1}
  #allocation0 [shape = 'u32[]', space=smem, size = 0x4, offset = 0x4, fixed_abs, tag = 'smem constant byte address 0x4 - core index']
  #allocation1 [shape = 'u32[144,128]{1,0:T(1,128)}', space=vmem, size = 0x12000, scoped, tag = 'internal scratch']
  #allocation2 [shape = 'f32[32,128]{1,0:T(8,128)}', space=vmem, size = 0x4000, scoped, tag = 'scratch operand']
  #allocation3 [shape = 'f32[32,128]{1,0:T(8,128)}', space=vmem, size = 0x4000, scoped, tag = 'scratch operand']
  #allocation4 [shape = 'f32[32,128]{1,0:T(8,128)}', space=vmem, size = 0x4000, scoped, tag = 'scratch operand']
  #allocation5 [shape = 'f32[32,128]{1,0:T(8,128)}', space=vmem, size = 0x4000, scoped, tag = 'scratch operand']
  #allocation6 [shape = 'f32[32,128]{1,0:T(8,128)}', space=vmem, size = 0x4000, scoped, tag = 'scratch operand']
  #allocation7 [shape = 'f32[32,128]{1,0:T(8,128)}', space=vmem, size = 0x4000, scoped, tag = 'scratch operand']
  %s0 = inlined_call_operand.vmem [shape: f32[9], index: 0, kind: input, shape index: {}]
  %s1 = inlined_call_operand.vmem [shape: f32[9], index: 1, kind: input, shape index: {}]
  %s2 = inlined_call_operand.vmem [shape: f32[2], index: 2, kind: input, shape index: {}]
  %s3 = inlined_call_operand.vmem [shape: f32[2,16,128], index: 3, kind: input, shape index: {}]
  %s4 = inlined_call_operand.vmem [shape: f32[16,128], index: 4, kind: input, shape index: {}]
  %s5 = inlined_call_operand.vmem [shape: f32[16,128], index: 5, kind: input, shape index: {}]
  %s6 = inlined_call_operand.vmem [shape: f32[16,128], index: 6, kind: input, shape index: {}]
  %s7 = inlined_call_operand.vmem [shape: f32[16,128], index: 7, kind: input, shape index: {}]
  %s8 = inlined_call_operand.vmem [shape: f32[16,128], index: 8, kind: output, shape index: {0}]
  %s9 = inlined_call_operand.vmem [shape: f32[16,128], index: 9, kind: output, shape index: {1}]
  %s10 = inlined_call_operand.vmem [shape: f32[16,128], index: 10, kind: output, shape index: {2}]
  %s11 = inlined_call_operand.vmem [shape: f32[16,128], index: 11, kind: output, shape index: {3}]
  %12 = xla_tuple %s8, %s9, %s10, %s11
  %s13 = sld [smem:[#allocation0]]
  $region78: #{usnc_conv_forward.1} parent=0
    _
  %s15 = ssub.s32 1, %s13
  %s16 = scalar_select 0, %s15, %s13
  $region1: #{usnc_conv_forward.1} parent=0
    #allocation8 [shape = 'u8[512]{0}', space=smem, size = 0x200, scoped, tag = 'input window, operand 0, single buffered']
    #allocation9 [shape = 's32[1]{0}', space=sflag, size = 0x4, scoped, tag = 'scoped memory for usnc_conv_forward.1']
    #allocation10 [shape = 'u8[512]{0}', space=smem, size = 0x200, scoped, tag = 'input window, operand 1, single buffered']
    #allocation11 [shape = 's32[1]{0}', space=sflag, size = 0x4, scoped, tag = 'scoped memory for usnc_conv_forward.1']
    #allocation12 [shape = 'u8[512]{0}', space=smem, size = 0x200, scoped, tag = 'input window, operand 2, single buffered']
    %17 = vsyncpa [#allocation9], 0
    %18 = vsyncpa [#allocation11], 0
    // Predicated region
    $region2: #{usnc_conv_forward.1} parent=1 // pred_check
      _
    $region3: #{usnc_conv_forward.1} parent=1 // pred_check_branch
      %20 = sbr.rel (0) target = $region5
    $region4: #{usnc_conv_forward.1} parent=1 // pred_region
      %s22 = ssub.s32 16, 16
      %23 = vsyncadd [#allocation9], %s22
      %s25 = sshll.u32 %s0, 4
      %s26 = int_to_ptr.vmem [resolvable:$true] %s25
      %28 = dma.vmem_to_smem %s26, 16, [#allocation8], [#allocation9]
    $region5: #{usnc_conv_forward.1} parent=1 // pred_fallthru
      _
    // Predicated region
    $region6: #{usnc_conv_forward.1} parent=1 // pred_check
      _
    $region7: #{usnc_conv_forward.1} parent=1 // pred_check_branch
      %30 = sbr.rel (0) target = $region9
    $region8: #{usnc_conv_forward.1} parent=1 // pred_region
      %s32 = ssub.s32 16, 16
      %33 = vsyncadd [#allocation11], %s32
      %s35 = sshll.u32 %s1, 4
      %s36 = int_to_ptr.vmem [resolvable:$true] %s35
      %38 = dma.vmem_to_smem %s36, 16, [#allocation10], [#allocation11]
    $region9: #{usnc_conv_forward.1} parent=1 // pred_fallthru
      _
    // Predicated region
    $region10: #{usnc_conv_forward.1} parent=1 // pred_check
      _
    $region11: #{usnc_conv_forward.1} parent=1 // pred_check_branch
      %40 = sbr.rel (0) target = $region13
    $region12: #{usnc_conv_forward.1} parent=1 // pred_region
      %s42 = ssub.s32 16, 16
      %43 = vsyncadd [#allocation11], %s42
      %s45 = sshll.u32 %s2, 4
      %s46 = int_to_ptr.vmem [resolvable:$true] %s45
      %48 = dma.vmem_to_smem %s46, 16, [#allocation12], [#allocation11]
    $region13: #{usnc_conv_forward.1} parent=1 // pred_fallthru
      _
    // Predicated region
    $region14: #{usnc_conv_forward.1} parent=1 // pred_check
      _
    $region15: #{usnc_conv_forward.1} parent=1 // pred_check_branch
      %50 = sbr.rel (0) target = $region17
    $region16: #{usnc_conv_forward.1} parent=1 // pred_region
      _
    $region17: #{usnc_conv_forward.1} parent=1 // pred_fallthru
      _
    // Predicated region
    $region18: #{usnc_conv_forward.1} parent=1 // pred_check
      _
    $region19: #{usnc_conv_forward.1} parent=1 // pred_check_branch
      %52 = sbr.rel (0) target = $region21
    $region20: #{usnc_conv_forward.1} parent=1 // pred_region
      _
    $region21: #{usnc_conv_forward.1} parent=1 // pred_fallthru
      _
    // Predicated region
    $region22: #{usnc_conv_forward.1} parent=1 // pred_check
      _
    $region23: #{usnc_conv_forward.1} parent=1 // pred_check_branch
      %54 = sbr.rel (0) target = $region25
    $region24: #{usnc_conv_forward.1} parent=1 // pred_region
      _
    $region25: #{usnc_conv_forward.1} parent=1 // pred_fallthru
      _
    // Predicated region
    $region26: #{usnc_conv_forward.1} parent=1 // pred_check
      _
    $region27: #{usnc_conv_forward.1} parent=1 // pred_check_branch
      %56 = sbr.rel (0) target = $region29
    $region28: #{usnc_conv_forward.1} parent=1 // pred_region
      _
    $region29: #{usnc_conv_forward.1} parent=1 // pred_fallthru
      _
    // Predicated region
    $region30: #{usnc_conv_forward.1} parent=1 // pred_check
      _
    $region31: #{usnc_conv_forward.1} parent=1 // pred_check_branch
      %58 = sbr.rel (0) target = $region33
    $region32: #{usnc_conv_forward.1} parent=1 // pred_region
      _
    $region33: #{usnc_conv_forward.1} parent=1 // pred_fallthru
      _
    // Predicated region
    $region34: #{usnc_conv_forward.1} parent=1 // pred_check
      _
    $region35: #{usnc_conv_forward.1} parent=1 // pred_check_branch
      %60 = sbr.rel (0) target = $region37
    $region36: #{usnc_conv_forward.1} parent=1 // pred_region
      %61 = dma.done [#allocation9], 16
    $region37: #{usnc_conv_forward.1} parent=1 // pred_fallthru
      _
    // Predicated region
    $region38: #{usnc_conv_forward.1} parent=1 // pred_check
      _
    $region39: #{usnc_conv_forward.1} parent=1 // pred_check_branch
      %63 = sbr.rel (0) target = $region41
    $region40: #{usnc_conv_forward.1} parent=1 // pred_region
      %64 = dma.done [#allocation11], 16
    $region41: #{usnc_conv_forward.1} parent=1 // pred_fallthru
      _
    // Predicated region
    $region42: #{usnc_conv_forward.1} parent=1 // pred_check
      _
    $region43: #{usnc_conv_forward.1} parent=1 // pred_check_branch
      %66 = sbr.rel (0) target = $region45
    $region44: #{usnc_conv_forward.1} parent=1 // pred_region
      %67 = dma.done [#allocation11], 16
    $region45: #{usnc_conv_forward.1} parent=1 // pred_fallthru
      _
    %68 = sfence
    %v69 = vld [vmem:[%s3] sm:$0xff]
    %v70 = vld [vmem:[%s3 + $0x8] sm:$0xff]
    %s71 = scalar_lea.vmem %s3, 16
    %v72 = vld [vmem:[%s71] sm:$0xff]
    %v73 = vld [vmem:[%s71 + $0x8] sm:$0xff]
    %74 = vst [vmem:[#allocation2] sm:$0xff] 0.0
    %75 = vst [vmem:[#allocation2 + $0x18] sm:$0xff] 0.0
    %76 = vst [vmem:[#allocation3] sm:$0xff] 0.0
    %77 = vst [vmem:[#allocation3 + $0x18] sm:$0xff] 0.0
    %78 = vst [vmem:[#allocation4] sm:$0xff] 0.0
    %79 = vst [vmem:[#allocation4 + $0x18] sm:$0xff] 0.0
    %80 = vst [vmem:[#allocation5] sm:$0xff] 0.0
    %81 = vst [vmem:[#allocation5 + $0x18] sm:$0xff] 0.0
    %82 = vst [vmem:[#allocation6] sm:$0xff] 0.0
    %83 = vst [vmem:[#allocation6 + $0x18] sm:$0xff] 0.0
    %84 = vst [vmem:[#allocation7] sm:$0xff] 0.0
    %85 = vst [vmem:[#allocation7 + $0x18] sm:$0xff] 0.0
    %v86 = vld [vmem:[%s4] sm:$0xff]
    %v87 = vld [vmem:[%s4 + $0x8] sm:$0xff]
    %v88 = vld [vmem:[%s5] sm:$0xff]
    %v89 = vld [vmem:[%s5 + $0x8] sm:$0xff]
    %v90 = vadd.f32 %v88, 1e-20
    %v91 = vadd.f32 %v89, 1e-20
    %v92 = vrcp.pop %v90
    %v93 = vrcp.pop %v91
    %v94 = vmul.f32 %v90, %v92
    %v95 = vmul.f32 %v91, %v93
    %v96 = vsub.f32 2.0, %v94
    %v97 = vsub.f32 2.0, %v95
    %v98 = vmul.f32 %v92, %v96
    %v99 = vmul.f32 %v93, %v97
    %v100 = vmul.f32 %v86, %v98
    %v101 = vmul.f32 %v87, %v99
    %v102 = vmul.f32 %v100, %v88
    %v103 = vmul.f32 %v101, %v89
    %v104 = vadd.f32 %v100, 1e-20
    %v105 = vadd.f32 %v101, 1e-20
    %v106 = vrcp.pop %v104
    %v107 = vrcp.pop %v105
    %v108 = vmul.f32 %v104, %v106
    %v109 = vmul.f32 %v105, %v107
    %v110 = vsub.f32 2.0, %v108
    %v111 = vsub.f32 2.0, %v109
    %v112 = vmul.f32 %v106, %v110
    %v113 = vmul.f32 %v107, %v111
    %v114 = vmul.f32 %v88, %v112
    %v115 = vmul.f32 %v89, %v113
    %116 = vrot.lane.b32.xlu0 %v100, 1
    %v117 = vpop.permute.xlu0 %116
    %118 = vrot.lane.b32.xlu0 %v101, 1
    %v119 = vpop.permute.xlu0 %118
    %v120 = vmul.f32 %v117, %v69
    %v121 = vmul.f32 %v119, %v70
    %122 = vrot.lane.b32.xlu0 %v100, 127
    %v123 = vpop.permute.xlu0 %122
    %124 = vrot.lane.b32.xlu0 %v101, 127
    %v125 = vpop.permute.xlu0 %124
    %v126 = vmul.f32 %v123, %v72
    %v127 = vmul.f32 %v125, %v73
    %128 = vrot.lane.b32.xlu0 %v88, 1
    %v129 = vpop.permute.xlu0 %128
    %130 = vrot.lane.b32.xlu0 %v89, 1
    %v131 = vpop.permute.xlu0 %130
    %v132 = vmul.f32 %v129, %v69
    %v133 = vmul.f32 %v131, %v70
    %134 = vrot.lane.b32.xlu0 %v88, 127
    %v135 = vpop.permute.xlu0 %134
    %136 = vrot.lane.b32.xlu0 %v89, 127
    %v137 = vpop.permute.xlu0 %136
    %v138 = vmul.f32 %v135, %v72
    %v139 = vmul.f32 %v137, %v73
    %140 = vrot.lane.b32.xlu0 %v102, 1
    %v141 = vpop.permute.xlu0 %140
    %142 = vrot.lane.b32.xlu0 %v103, 1
    %v143 = vpop.permute.xlu0 %142
    %v144 = vmul.f32 %v141, %v69
    %v145 = vmul.f32 %v143, %v70
    %146 = vrot.lane.b32.xlu0 %v102, 127
    %v147 = vpop.permute.xlu0 %146
    %148 = vrot.lane.b32.xlu0 %v103, 127
    %v149 = vpop.permute.xlu0 %148
    %v150 = vmul.f32 %v147, %v72
    %v151 = vmul.f32 %v149, %v73
    %152 = vrot.lane.b32.xlu0 %v114, 1
    %v153 = vpop.permute.xlu0 %152
    %154 = vrot.lane.b32.xlu0 %v115, 1
    %v155 = vpop.permute.xlu0 %154
    %v156 = vmul.f32 %v153, %v69
    %v157 = vmul.f32 %v155, %v70
    %158 = vrot.lane.b32.xlu0 %v114, 127
    %v159 = vpop.permute.xlu0 %158
    %160 = vrot.lane.b32.xlu0 %v115, 127
    %v161 = vpop.permute.xlu0 %160
    %v162 = vmul.f32 %v159, %v72
    %v163 = vmul.f32 %v161, %v73
    %vm164 = vcmp.gt.f32.partialorder %v102, %v144
    %vm165 = vcmp.gt.f32.partialorder %v103, %v145
    %v166 = vsel %vm164, %v102, %v144
    %v167 = vsel %vm165, %v103, %v145
    %v168 = vsel %vm164, %v100, %v120
    %v169 = vsel %vm165, %v101, %v121
    %v170 = vsel %vm164, %v88, %v132
    %v171 = vsel %vm165, %v89, %v133
    %vm172 = vcmp.gt.f32.partialorder %v150, %v166
    %vm173 = vcmp.gt.f32.partialorder %v151, %v167
    %v174 = vsel %vm172, %v150, %v166
    %v175 = vsel %vm173, %v151, %v167
    %v176 = vsel %vm172, %v126, %v168
    %v177 = vsel %vm173, %v127, %v169
    %v178 = vsel %vm172, %v138, %v170
    %v179 = vsel %vm173, %v139, %v171
    %vm180 = vcmp.gt.f32.partialorder %v114, %v156
    %vm181 = vcmp.gt.f32.partialorder %v115, %v157
    %v182 = vsel %vm180, %v114, %v156
    %v183 = vsel %vm181, %v115, %v157
    %v184 = vsel %vm180, %v100, %v120
    %v185 = vsel %vm181, %v101, %v121
    %v186 = vsel %vm180, %v88, %v132
    %v187 = vsel %vm181, %v89, %v133
    %vm188 = vcmp.gt.f32.partialorder %v162, %v182
    %vm189 = vcmp.gt.f32.partialorder %v163, %v183
    %v190 = vsel %vm188, %v162, %v182
    %v191 = vsel %vm189, %v163, %v183
    %v192 = vsel %vm188, %v126, %v184
    %v193 = vsel %vm189, %v127, %v185
    %v194 = vsel %vm188, %v138, %v186
    %v195 = vsel %vm189, %v139, %v187
    %196 = vst [vmem:[#allocation2 + $0x8] sm:$0xff] %v174
    %197 = vst [vmem:[#allocation2 + $0x10] sm:$0xff] %v175
    %198 = vst [vmem:[#allocation3 + $0x8] sm:$0xff] %v176
    %199 = vst [vmem:[#allocation3 + $0x10] sm:$0xff] %v177
    %200 = vst [vmem:[#allocation4 + $0x8] sm:$0xff] %v178
    %201 = vst [vmem:[#allocation4 + $0x10] sm:$0xff] %v179
    %202 = vst [vmem:[#allocation5 + $0x8] sm:$0xff] %v190
    %203 = vst [vmem:[#allocation5 + $0x10] sm:$0xff] %v191
    %204 = vst [vmem:[#allocation6 + $0x8] sm:$0xff] %v192
    %205 = vst [vmem:[#allocation6 + $0x10] sm:$0xff] %v193
    %206 = vst [vmem:[#allocation7 + $0x8] sm:$0xff] %v194
    %207 = vst [vmem:[#allocation7 + $0x10] sm:$0xff] %v195
    %v208 = vld [vmem:[#allocation2 + $0x7] sm:$0xff]
    %v209 = vld [vmem:[#allocation2 + $0xf] sm:$0xff]
    %v210 = vld [vmem:[#allocation3 + $0x7] sm:$0xff]
    %v211 = vld [vmem:[#allocation3 + $0xf] sm:$0xff]
    %v212 = vld [vmem:[#allocation4 + $0x7] sm:$0xff]
    %v213 = vld [vmem:[#allocation4 + $0xf] sm:$0xff]
    %vm214 = vcmp.gt.f32.partialorder %v174, %v208
    %vm215 = vcmp.gt.f32.partialorder %v175, %v209
    %v216 = vsel %vm214, %v174, %v208
    %v217 = vsel %vm215, %v175, %v209
    %v218 = vsel %vm214, %v176, %v210
    %v219 = vsel %vm215, %v177, %v211
    %v220 = vsel %vm214, %v178, %v212
    %v221 = vsel %vm215, %v179, %v213
    %v222 = vld [vmem:[#allocation2 + $0x9] sm:$0xff]
    %v223 = vld [vmem:[#allocation2 + $0x11] sm:$0xff]
    %v224 = vld [vmem:[#allocation3 + $0x9] sm:$0xff]
    %v225 = vld [vmem:[#allocation3 + $0x11] sm:$0xff]
    %v226 = vld [vmem:[#allocation4 + $0x9] sm:$0xff]
    %v227 = vld [vmem:[#allocation4 + $0x11] sm:$0xff]
    %vm228 = vcmp.gt.f32.partialorder %v222, %v216
    %vm229 = vcmp.gt.f32.partialorder %v223, %v217
    %v230 = vsel %vm228, %v224, %v218
    %v231 = vsel %vm229, %v225, %v219
    %v232 = vsel %vm228, %v226, %v220
    %v233 = vsel %vm229, %v227, %v221
    %v234 = vld [vmem:[#allocation5 + $0x7] sm:$0xff]
    %v235 = vld [vmem:[#allocation5 + $0xf] sm:$0xff]
    %v236 = vld [vmem:[#allocation6 + $0x7] sm:$0xff]
    %v237 = vld [vmem:[#allocation6 + $0xf] sm:$0xff]
    %v238 = vld [vmem:[#allocation7 + $0x7] sm:$0xff]
    %v239 = vld [vmem:[#allocation7 + $0xf] sm:$0xff]
    %vm240 = vcmp.gt.f32.partialorder %v190, %v234
    %vm241 = vcmp.gt.f32.partialorder %v191, %v235
    %v242 = vsel %vm240, %v190, %v234
    %v243 = vsel %vm241, %v191, %v235
    %v244 = vsel %vm240, %v192, %v236
    %v245 = vsel %vm241, %v193, %v237
    %v246 = vsel %vm240, %v194, %v238
    %v247 = vsel %vm241, %v195, %v239
    %v248 = vld [vmem:[#allocation5 + $0x9] sm:$0xff]
    %v249 = vld [vmem:[#allocation5 + $0x11] sm:$0xff]
    %v250 = vld [vmem:[#allocation6 + $0x9] sm:$0xff]
    %v251 = vld [vmem:[#allocation6 + $0x11] sm:$0xff]
    %v252 = vld [vmem:[#allocation7 + $0x9] sm:$0xff]
    %v253 = vld [vmem:[#allocation7 + $0x11] sm:$0xff]
    %vm254 = vcmp.gt.f32.partialorder %v248, %v242
    %vm255 = vcmp.gt.f32.partialorder %v249, %v243
    %v256 = vsel %vm254, %v250, %v244
    %v257 = vsel %vm255, %v251, %v245
    %v258 = vsel %vm254, %v252, %v246
    %v259 = vsel %vm255, %v253, %v247
    %s260 = sld [smem:[#allocation12]]
    %s261 = sld [smem:[#allocation12 + $0x1]]
    %v262 = vadd.f32 %v256, 1e-20
    %v263 = vadd.f32 %v257, 1e-20
    %v264 = vadd.f32 %v230, 1e-20
    %v265 = vadd.f32 %v231, 1e-20
    %v266 = vrcp.pop %v264
    %v267 = vrcp.pop %v265
    %v268 = vmul.f32 %v264, %v266
    %v269 = vmul.f32 %v265, %v267
    %v270 = vsub.f32 2.0, %v268
    %v271 = vsub.f32 2.0, %v269
    %v272 = vmul.f32 %v266, %v270
    %v273 = vmul.f32 %v267, %v271
    %v274 = vmul.f32 %v262, %v272
    %v275 = vmul.f32 %v263, %v273
    %v276 = vlog2.pop %v274
    %v277 = vmul.f32 %v276, 0.6931472
    %v278 = vlog2.pop %v275
    %v279 = vmul.f32 %v278, 0.6931472
    %v280 = vstv %s261
    %v281 = vmul.f32 %v280, %v277
    %v282 = vmul.f32 %v280, %v279
    %v283 = vmul.f32 %v281, 1.442695
    %v284 = vpow.pop %v283
    %v285 = vmul.f32 %v282, 1.442695
    %v286 = vpow.pop %v285
    %v287 = vmul.f32 %v232, %v258
    %v288 = vmul.f32 %v233, %v259
    %s289 = ssub.f32 1.0, %s260
    %v290 = vld [vmem:[%s7] sm:$0xff]
    %v291 = vld [vmem:[%s7 + $0x8] sm:$0xff]
    %v292 = vstv %s260
    %v293 = vmul.f32 %v290, %v292
    %v294 = vmul.f32 %v291, %v292
    %v295 = vstv %s289
    %v296 = vmul.f32 %v287, %v295
    %v297 = vmul.f32 %v288, %v295
    %v298 = vadd.f32 %v293, %v296
    %v299 = vadd.f32 %v294, %v297
    %v300 = vld [vmem:[%s6] sm:$0xff]
    %v301 = vld [vmem:[%s6 + $0x8] sm:$0xff]
    %v302 = vmul.f32 %v300, %v292
    %v303 = vmul.f32 %v301, %v292
    %v304 = vmul.f32 %v284, %v287
    %v305 = vmul.f32 %v286, %v288
    %v306 = vmul.f32 %v304, %v295
    %v307 = vmul.f32 %v305, %v295
    %v308 = vadd.f32 %v302, %v306
    %v309 = vadd.f32 %v303, %v307
    %310 = vrot.lane.b32.xlu0 %v298, 1
    %v311 = vpop.permute.xlu0 %310
    %312 = vrot.lane.b32.xlu0 %v299, 1
    %v313 = vpop.permute.xlu0 %312
    %v314 = vmul.f32 %v311, %v69
    %v315 = vmul.f32 %v313, %v70
    %316 = vrot.lane.b32.xlu0 %v298, 127
    %v317 = vpop.permute.xlu0 %316
    %318 = vrot.lane.b32.xlu0 %v299, 127
    %v319 = vpop.permute.xlu0 %318
    %v320 = vmul.f32 %v317, %v72
    %v321 = vmul.f32 %v319, %v73
    %s322 = sld [smem:[#allocation10]]
    %v323 = vstv %s322
    %v324 = vmul.f32 %v323, %v314
    %v325 = vmul.f32 %v323, %v315
    %s326 = sld [smem:[#allocation10 + $0x1]]
    %v327 = vstv %s326
    %v328 = vmul.f32 %v327, %v298
    %v329 = vmul.f32 %v327, %v299
    %v330 = vadd.f32 %v324, %v328
    %v331 = vadd.f32 %v325, %v329
    %s332 = sld [smem:[#allocation10 + $0x2]]
    %v333 = vstv %s332
    %v334 = vmul.f32 %v333, %v320
    %v335 = vmul.f32 %v333, %v321
    %v336 = vadd.f32 %v330, %v334
    %v337 = vadd.f32 %v331, %v335
    %338 = vst [vmem:[#allocation2 + $0x8] sm:$0xff] %v336
    %339 = vst [vmem:[#allocation2 + $0x10] sm:$0xff] %v337
    %s340 = sld [smem:[#allocation10 + $0x6]]
    %v341 = vstv %s340
    %v342 = vmul.f32 %v341, %v314
    %v343 = vmul.f32 %v341, %v315
    %s344 = sld [smem:[#allocation10 + $0x7]]
    %v345 = vstv %s344
    %v346 = vmul.f32 %v345, %v298
    %v347 = vmul.f32 %v345, %v299
    %v348 = vadd.f32 %v342, %v346
    %v349 = vadd.f32 %v343, %v347
    %s350 = sld [smem:[#allocation10 + $0x8]]
    %v351 = vstv %s350
    %v352 = vmul.f32 %v351, %v320
    %v353 = vmul.f32 %v351, %v321
    %v354 = vadd.f32 %v348, %v352
    %v355 = vadd.f32 %v349, %v353
    %356 = vst [vmem:[#allocation3 + $0x8] sm:$0xff] %v354
    %357 = vst [vmem:[#allocation3 + $0x10] sm:$0xff] %v355
    %v358 = vld [vmem:[#allocation2 + $0x7] sm:$0xff]
    %v359 = vld [vmem:[#allocation2 + $0xf] sm:$0xff]
    %s360 = sld [smem:[#allocation10 + $0x3]]
    %v361 = vstv %s360
    %v362 = vmul.f32 %v361, %v314
    %v363 = vmul.f32 %v361, %v315
    %s364 = sld [smem:[#allocation10 + $0x4]]
    %v365 = vstv %s364
    %v366 = vmul.f32 %v365, %v298
    %v367 = vmul.f32 %v365, %v299
    %v368 = vadd.f32 %v362, %v366
    %v369 = vadd.f32 %v363, %v367
    %s370 = sld [smem:[#allocation10 + $0x5]]
    %v371 = vstv %s370
    %v372 = vmul.f32 %v371, %v320
    %v373 = vmul.f32 %v371, %v321
    %v374 = vadd.f32 %v368, %v372
    %v375 = vadd.f32 %v369, %v373
    %v376 = vadd.f32 %v358, %v374
    %v377 = vadd.f32 %v359, %v375
    %v378 = vld [vmem:[#allocation3 + $0x9] sm:$0xff]
    %v379 = vld [vmem:[#allocation3 + $0x11] sm:$0xff]
    %v380 = vadd.f32 %v376, %v378
    %v381 = vadd.f32 %v377, %v379
    %382 = vrot.lane.b32.xlu0 %v308, 1
    %v383 = vpop.permute.xlu0 %382
    %384 = vrot.lane.b32.xlu0 %v309, 1
    %v385 = vpop.permute.xlu0 %384
    %v386 = vmul.f32 %v383, %v69
    %v387 = vmul.f32 %v385, %v70
    %388 = vrot.lane.b32.xlu0 %v308, 127
    %v389 = vpop.permute.xlu0 %388
    %390 = vrot.lane.b32.xlu0 %v309, 127
    %v391 = vpop.permute.xlu0 %390
    %v392 = vmul.f32 %v389, %v72
    %v393 = vmul.f32 %v391, %v73
    %s394 = sld [smem:[#allocation10]]
    %v395 = vstv %s394
    %v396 = vmul.f32 %v395, %v386
    %v397 = vmul.f32 %v395, %v387
    %s398 = sld [smem:[#allocation10 + $0x1]]
    %v399 = vstv %s398
    %v400 = vmul.f32 %v399, %v308
    %v401 = vmul.f32 %v399, %v309
    %v402 = vadd.f32 %v396, %v400
    %v403 = vadd.f32 %v397, %v401
    %s404 = sld [smem:[#allocation10 + $0x2]]
    %v405 = vstv %s404
    %v406 = vmul.f32 %v405, %v392
    %v407 = vmul.f32 %v405, %v393
    %v408 = vadd.f32 %v402, %v406
    %v409 = vadd.f32 %v403, %v407
    %410 = vst [vmem:[#allocation4 + $0x8] sm:$0xff] %v408
    %411 = vst [vmem:[#allocation4 + $0x10] sm:$0xff] %v409
    %s412 = sld [smem:[#allocation10 + $0x6]]
    %v413 = vstv %s412
    %v414 = vmul.f32 %v413, %v386
    %v415 = vmul.f32 %v413, %v387
    %s416 = sld [smem:[#allocation10 + $0x7]]
    %v417 = vstv %s416
    %v418 = vmul.f32 %v417, %v308
    %v419 = vmul.f32 %v417, %v309
    %v420 = vadd.f32 %v414, %v418
    %v421 = vadd.f32 %v415, %v419
    %s422 = sld [smem:[#allocation10 + $0x8]]
    %v423 = vstv %s422
    %v424 = vmul.f32 %v423, %v392
    %v425 = vmul.f32 %v423, %v393
    %v426 = vadd.f32 %v420, %v424
    %v427 = vadd.f32 %v421, %v425
    %428 = vst [vmem:[#allocation5 + $0x8] sm:$0xff] %v426
    %429 = vst [vmem:[#allocation5 + $0x10] sm:$0xff] %v427
    %v430 = vld [vmem:[#allocation4 + $0x7] sm:$0xff]
    %v431 = vld [vmem:[#allocation4 + $0xf] sm:$0xff]
    %s432 = sld [smem:[#allocation10 + $0x3]]
    %v433 = vstv %s432
    %v434 = vmul.f32 %v433, %v386
    %v435 = vmul.f32 %v433, %v387
    %s436 = sld [smem:[#allocation10 + $0x4]]
    %v437 = vstv %s436
    %v438 = vmul.f32 %v437, %v308
    %v439 = vmul.f32 %v437, %v309
    %v440 = vadd.f32 %v434, %v438
    %v441 = vadd.f32 %v435, %v439
    %s442 = sld [smem:[#allocation10 + $0x5]]
    %v443 = vstv %s442
    %v444 = vmul.f32 %v443, %v392
    %v445 = vmul.f32 %v443, %v393
    %v446 = vadd.f32 %v440, %v444
    %v447 = vadd.f32 %v441, %v445
    %v448 = vadd.f32 %v430, %v446
    %v449 = vadd.f32 %v431, %v447
    %v450 = vld [vmem:[#allocation5 + $0x9] sm:$0xff]
    %v451 = vld [vmem:[#allocation5 + $0x11] sm:$0xff]
    %v452 = vadd.f32 %v448, %v450
    %v453 = vadd.f32 %v449, %v451
    %v454 = vadd.f32 %v380, 1e-20
    %v455 = vadd.f32 %v381, 1e-20
    %v456 = vrcp.pop %v454
    %v457 = vrcp.pop %v455
    %v458 = vmul.f32 %v454, %v456
    %v459 = vmul.f32 %v455, %v457
    %v460 = vsub.f32 2.0, %v458
    %v461 = vsub.f32 2.0, %v459
    %v462 = vmul.f32 %v456, %v460
    %v463 = vmul.f32 %v457, %v461
    %v464 = vmul.f32 %v452, %v462
    %v465 = vmul.f32 %v453, %v463
    %466 = vrot.lane.b32.xlu0 %v464, 1
    %v467 = vpop.permute.xlu0 %466
    %468 = vrot.lane.b32.xlu0 %v465, 1
    %v469 = vpop.permute.xlu0 %468
    %v470 = vmul.f32 %v467, %v69
    %v471 = vmul.f32 %v469, %v70
    %472 = vrot.lane.b32.xlu0 %v464, 127
    %v473 = vpop.permute.xlu0 %472
    %474 = vrot.lane.b32.xlu0 %v465, 127
    %v475 = vpop.permute.xlu0 %474
    %v476 = vmul.f32 %v473, %v72
    %v477 = vmul.f32 %v475, %v73
    %s478 = sld [smem:[#allocation8]]
    %v479 = vstv %s478
    %v480 = vmul.f32 %v479, %v470
    %v481 = vmul.f32 %v479, %v471
    %s482 = sld [smem:[#allocation8 + $0x1]]
    %v483 = vstv %s482
    %v484 = vmul.f32 %v483, %v464
    %v485 = vmul.f32 %v483, %v465
    %v486 = vadd.f32 %v480, %v484
    %v487 = vadd.f32 %v481, %v485
    %s488 = sld [smem:[#allocation8 + $0x2]]
    %v489 = vstv %s488
    %v490 = vmul.f32 %v489, %v476
    %v491 = vmul.f32 %v489, %v477
    %v492 = vadd.f32 %v486, %v490
    %v493 = vadd.f32 %v487, %v491
    %494 = vst [vmem:[#allocation6 + $0x8] sm:$0xff] %v492
    %495 = vst [vmem:[#allocation6 + $0x10] sm:$0xff] %v493
    %s496 = sld [smem:[#allocation8 + $0x6]]
    %v497 = vstv %s496
    %v498 = vmul.f32 %v497, %v470
    %v499 = vmul.f32 %v497, %v471
    %s500 = sld [smem:[#allocation8 + $0x7]]
    %v501 = vstv %s500
    %v502 = vmul.f32 %v501, %v464
    %v503 = vmul.f32 %v501, %v465
    %v504 = vadd.f32 %v498, %v502
    %v505 = vadd.f32 %v499, %v503
    %s506 = sld [smem:[#allocation8 + $0x8]]
    %v507 = vstv %s506
    %v508 = vmul.f32 %v507, %v476
    %v509 = vmul.f32 %v507, %v477
    %v510 = vadd.f32 %v504, %v508
    %v511 = vadd.f32 %v505, %v509
    %512 = vst [vmem:[#allocation7 + $0x8] sm:$0xff] %v510
    %513 = vst [vmem:[#allocation7 + $0x10] sm:$0xff] %v511
    %v514 = vld [vmem:[#allocation6 + $0x7] sm:$0xff]
    %v515 = vld [vmem:[#allocation6 + $0xf] sm:$0xff]
    %s516 = sld [smem:[#allocation8 + $0x3]]
    %v517 = vstv %s516
    %v518 = vmul.f32 %v517, %v470
    %v519 = vmul.f32 %v517, %v471
    %s520 = sld [smem:[#allocation8 + $0x5]]
    %v521 = vstv %s520
    %v522 = vmul.f32 %v521, %v476
    %v523 = vmul.f32 %v521, %v477
    %v524 = vadd.f32 %v518, %v522
    %v525 = vadd.f32 %v519, %v523
    %v526 = vadd.f32 %v514, %v524
    %v527 = vadd.f32 %v515, %v525
    %v528 = vld [vmem:[#allocation7 + $0x9] sm:$0xff]
    %v529 = vld [vmem:[#allocation7 + $0x11] sm:$0xff]
    %v530 = vadd.f32 %v526, %v528
    %v531 = vadd.f32 %v527, %v529
    %v532 = vmul.f32 %v464, %v86
    %v533 = vmul.f32 %v465, %v87
    %534 = vrot.lane.b32.xlu0 %v532, 1
    %v535 = vpop.permute.xlu0 %534
    %536 = vrot.lane.b32.xlu0 %v533, 1
    %v537 = vpop.permute.xlu0 %536
    %v538 = vmul.f32 %v535, %v69
    %v539 = vmul.f32 %v537, %v70
    %540 = vrot.lane.b32.xlu0 %v532, 127
    %v541 = vpop.permute.xlu0 %540
    %542 = vrot.lane.b32.xlu0 %v533, 127
    %v543 = vpop.permute.xlu0 %542
    %v544 = vmul.f32 %v541, %v72
    %v545 = vmul.f32 %v543, %v73
    %s546 = sld [smem:[#allocation8]]
    %v547 = vstv %s546
    %v548 = vmul.f32 %v547, %v538
    %v549 = vmul.f32 %v547, %v539
    %s550 = sld [smem:[#allocation8 + $0x1]]
    %v551 = vstv %s550
    %v552 = vmul.f32 %v551, %v532
    %v553 = vmul.f32 %v551, %v533
    %v554 = vadd.f32 %v548, %v552
    %v555 = vadd.f32 %v549, %v553
    %s556 = sld [smem:[#allocation8 + $0x2]]
    %v557 = vstv %s556
    %v558 = vmul.f32 %v557, %v544
    %v559 = vmul.f32 %v557, %v545
    %v560 = vadd.f32 %v554, %v558
    %v561 = vadd.f32 %v555, %v559
    %562 = vst [vmem:[#allocation2 + $0x8] sm:$0xff] %v560
    %563 = vst [vmem:[#allocation2 + $0x10] sm:$0xff] %v561
    %s564 = sld [smem:[#allocation8 + $0x6]]
    %v565 = vstv %s564
    %v566 = vmul.f32 %v565, %v538
    %v567 = vmul.f32 %v565, %v539
    %s568 = sld [smem:[#allocation8 + $0x7]]
    %v569 = vstv %s568
    %v570 = vmul.f32 %v569, %v532
    %v571 = vmul.f32 %v569, %v533
    %v572 = vadd.f32 %v566, %v570
    %v573 = vadd.f32 %v567, %v571
    %s574 = sld [smem:[#allocation8 + $0x8]]
    %v575 = vstv %s574
    %v576 = vmul.f32 %v575, %v544
    %v577 = vmul.f32 %v575, %v545
    %v578 = vadd.f32 %v572, %v576
    %v579 = vadd.f32 %v573, %v577
    %580 = vst [vmem:[#allocation3 + $0x8] sm:$0xff] %v578
    %581 = vst [vmem:[#allocation3 + $0x10] sm:$0xff] %v579
    %v582 = vld [vmem:[#allocation2 + $0x7] sm:$0xff]
    %v583 = vld [vmem:[#allocation2 + $0xf] sm:$0xff]
    %s584 = sld [smem:[#allocation8 + $0x3]]
    %v585 = vstv %s584
    %v586 = vmul.f32 %v585, %v538
    %v587 = vmul.f32 %v585, %v539
    %s588 = sld [smem:[#allocation8 + $0x5]]
    %v589 = vstv %s588
    %v590 = vmul.f32 %v589, %v544
    %v591 = vmul.f32 %v589, %v545
    %v592 = vadd.f32 %v586, %v590
    %v593 = vadd.f32 %v587, %v591
    %v594 = vadd.f32 %v582, %v592
    %v595 = vadd.f32 %v583, %v593
    %v596 = vld [vmem:[#allocation3 + $0x9] sm:$0xff]
    %v597 = vld [vmem:[#allocation3 + $0x11] sm:$0xff]
    %v598 = vadd.f32 %v594, %v596
    %v599 = vadd.f32 %v595, %v597
    %v600 = vmul.f32 %v464, %v88
    %v601 = vmul.f32 %v465, %v89
    %602 = vrot.lane.b32.xlu0 %v600, 1
    %v603 = vpop.permute.xlu0 %602
    %604 = vrot.lane.b32.xlu0 %v601, 1
    %v605 = vpop.permute.xlu0 %604
    %v606 = vmul.f32 %v603, %v69
    %v607 = vmul.f32 %v605, %v70
    %608 = vrot.lane.b32.xlu0 %v600, 127
    %v609 = vpop.permute.xlu0 %608
    %610 = vrot.lane.b32.xlu0 %v601, 127
    %v611 = vpop.permute.xlu0 %610
    %v612 = vmul.f32 %v609, %v72
    %v613 = vmul.f32 %v611, %v73
    %s614 = sld [smem:[#allocation8]]
    %v615 = vstv %s614
    %v616 = vmul.f32 %v615, %v606
    %v617 = vmul.f32 %v615, %v607
    %s618 = sld [smem:[#allocation8 + $0x1]]
    %v619 = vstv %s618
    %v620 = vmul.f32 %v619, %v600
    %v621 = vmul.f32 %v619, %v601
    %v622 = vadd.f32 %v616, %v620
    %v623 = vadd.f32 %v617, %v621
    %s624 = sld [smem:[#allocation8 + $0x2]]
    %v625 = vstv %s624
    %v626 = vmul.f32 %v625, %v612
    %v627 = vmul.f32 %v625, %v613
    %v628 = vadd.f32 %v622, %v626
    %v629 = vadd.f32 %v623, %v627
    %630 = vst [vmem:[#allocation4 + $0x8] sm:$0xff] %v628
    %631 = vst [vmem:[#allocation4 + $0x10] sm:$0xff] %v629
    %s632 = sld [smem:[#allocation8 + $0x6]]
    %v633 = vstv %s632
    %v634 = vmul.f32 %v633, %v606
    %v635 = vmul.f32 %v633, %v607
    %s636 = sld [smem:[#allocation8 + $0x7]]
    %v637 = vstv %s636
    %v638 = vmul.f32 %v637, %v600
    %v639 = vmul.f32 %v637, %v601
    %v640 = vadd.f32 %v634, %v638
    %v641 = vadd.f32 %v635, %v639
    %s642 = sld [smem:[#allocation8 + $0x8]]
    %v643 = vstv %s642
    %v644 = vmul.f32 %v643, %v612
    %v645 = vmul.f32 %v643, %v613
    %v646 = vadd.f32 %v640, %v644
    %v647 = vadd.f32 %v641, %v645
    %648 = vst [vmem:[#allocation5 + $0x8] sm:$0xff] %v646
    %649 = vst [vmem:[#allocation5 + $0x10] sm:$0xff] %v647
    %v650 = vld [vmem:[#allocation4 + $0x7] sm:$0xff]
    %v651 = vld [vmem:[#allocation4 + $0xf] sm:$0xff]
    %s652 = sld [smem:[#allocation8 + $0x3]]
    %v653 = vstv %s652
    %v654 = vmul.f32 %v653, %v606
    %v655 = vmul.f32 %v653, %v607
    %s656 = sld [smem:[#allocation8 + $0x5]]
    %v657 = vstv %s656
    %v658 = vmul.f32 %v657, %v612
    %v659 = vmul.f32 %v657, %v613
    %v660 = vadd.f32 %v654, %v658
    %v661 = vadd.f32 %v655, %v659
    %v662 = vadd.f32 %v650, %v660
    %v663 = vadd.f32 %v651, %v661
    %v664 = vld [vmem:[#allocation5 + $0x9] sm:$0xff]
    %v665 = vld [vmem:[#allocation5 + $0x11] sm:$0xff]
    %v666 = vadd.f32 %v662, %v664
    %v667 = vadd.f32 %v663, %v665
    %s668 = sld [smem:[#allocation8 + $0x4]]
    %v669 = vmul.f32 %v464, %v530
    %v670 = vmul.f32 %v465, %v531
    %v671 = vstv %s668
    %v672 = vadd.f32 %v671, %v669
    %v673 = vadd.f32 %v671, %v670
    %v674 = vadd.f32 %v672, 1e-20
    %v675 = vadd.f32 %v673, 1e-20
    %v676 = vrcp.pop %v674
    %v677 = vrcp.pop %v675
    %v678 = vmul.f32 %v674, %v676
    %v679 = vmul.f32 %v675, %v677
    %v680 = vsub.f32 2.0, %v678
    %v681 = vsub.f32 2.0, %v679
    %v682 = vmul.f32 %v676, %v680
    %v683 = vmul.f32 %v677, %v681
    %v684 = vmul.f32 %v671, %v86
    %v685 = vmul.f32 %v671, %v87
    %v686 = vmul.f32 %v464, %v598
    %v687 = vmul.f32 %v465, %v599
    %v688 = vadd.f32 %v684, %v686
    %v689 = vadd.f32 %v685, %v687
    %v690 = vmul.f32 %v688, %v682
    %v691 = vmul.f32 %v689, %v683
    %692 = vst [vmem:[%s8] sm:$0xff] %v690
    %693 = vst [vmem:[%s8 + $0x8] sm:$0xff] %v691
    %v694 = vmul.f32 %v671, %v88
    %v695 = vmul.f32 %v671, %v89
    %v696 = vmul.f32 %v464, %v666
    %v697 = vmul.f32 %v465, %v667
    %v698 = vadd.f32 %v694, %v696
    %v699 = vadd.f32 %v695, %v697
    %v700 = vmul.f32 %v698, %v682
    %v701 = vmul.f32 %v699, %v683
    %702 = vst [vmem:[%s9] sm:$0xff] %v700
    %703 = vst [vmem:[%s9 + $0x8] sm:$0xff] %v701
    %704 = vst [vmem:[%s10] sm:$0xff] %v452
    %705 = vst [vmem:[%s10 + $0x8] sm:$0xff] %v453
    %706 = vst [vmem:[%s11] sm:$0xff] %v380
    %707 = vst [vmem:[%s11 + $0x8] sm:$0xff] %v381
    // Predicated region
    $region46: #{usnc_conv_forward.1} parent=1 // pred_check
      _
    $region47: #{usnc_conv_forward.1} parent=1 // pred_check_branch
      %709 = sbr.rel (0) target = $region49
    $region48: #{usnc_conv_forward.1} parent=1 // pred_region
      _
    $region49: #{usnc_conv_forward.1} parent=1 // pred_fallthru
      _
    // Predicated region
    $region50: #{usnc_conv_forward.1} parent=1 // pred_check
      _
    $region51: #{usnc_conv_forward.1} parent=1 // pred_check_branch
      %711 = sbr.rel (0) target = $region53
    $region52: #{usnc_conv_forward.1} parent=1 // pred_region
      _
    $region53: #{usnc_conv_forward.1} parent=1 // pred_fallthru
      _
    // Predicated region
    $region54: #{usnc_conv_forward.1} parent=1 // pred_check
      _
    $region55: #{usnc_conv_forward.1} parent=1 // pred_check_branch
      %713 = sbr.rel (0) target = $region57
    $region56: #{usnc_conv_forward.1} parent=1 // pred_region
      _
    $region57: #{usnc_conv_forward.1} parent=1 // pred_fallthru
      _
    // Predicated region
    $region58: #{usnc_conv_forward.1} parent=1 // pred_check
      _
    $region59: #{usnc_conv_forward.1} parent=1 // pred_check_branch
      %715 = sbr.rel (0) target = $region61
    $region60: #{usnc_conv_forward.1} parent=1 // pred_region
      _
    $region61: #{usnc_conv_forward.1} parent=1 // pred_fallthru
      _
    // Predicated region
    $region62: #{usnc_conv_forward.1} parent=1 // pred_check
      _
    $region63: #{usnc_conv_forward.1} parent=1 // pred_check_branch
      %717 = sbr.rel (0) target = $region65
    $region64: #{usnc_conv_forward.1} parent=1 // pred_region
      _
    $region65: #{usnc_conv_forward.1} parent=1 // pred_fallthru
      _
    // Predicated region
    $region66: #{usnc_conv_forward.1} parent=1 // pred_check
      _
    $region67: #{usnc_conv_forward.1} parent=1 // pred_check_branch
      %719 = sbr.rel (0) target = $region69
    $region68: #{usnc_conv_forward.1} parent=1 // pred_region
      _
    $region69: #{usnc_conv_forward.1} parent=1 // pred_fallthru
      _
    // Predicated region
    $region70: #{usnc_conv_forward.1} parent=1 // pred_check
      _
    $region71: #{usnc_conv_forward.1} parent=1 // pred_check_branch
      %721 = sbr.rel (0) target = $region73
    $region72: #{usnc_conv_forward.1} parent=1 // pred_region
      _
    $region73: #{usnc_conv_forward.1} parent=1 // pred_fallthru
      _
    // Predicated region
    $region74: #{usnc_conv_forward.1} parent=1 // pred_check
      _
    $region75: #{usnc_conv_forward.1} parent=1 // pred_check_branch
      %723 = sbr.rel (0) target = $region77
    $region76: #{usnc_conv_forward.1} parent=1 // pred_region
      _
    $region77: #{usnc_conv_forward.1} parent=1 // pred_fallthru
      _
    %724 = vsyncpa [#allocation9], 1
    %725 = vsyncpa [#allocation11], 1

</llo_original>
